<compile_context>
chip_gen: v7x
topology: tpu7x:2x2x1
jax: 0.10.0
libtpu: 0.0.40
codegen_flags: <defaults>
</compile_context>

<pallas_src>
import functools

import jax
import jax.numpy as jnp
from jax import lax
from jax.experimental import pallas as pl
from jax.experimental.pallas import tpu as pltpu


# ------------------------------ fused kernel --------------------------------

def fused_idrc_kernel(*refs, num_layers, topk, B, L, C):
    """Whole IDRCModel forward for the full batch in one invocation."""
    ids_ref, we_ref, amask_ref = refs[0], refs[1], refs[2]
    rest = refs[3:]
    layer_refs = rest[:2 * num_layers]
    (attn_w_ref, attn_b_ref, fc_w_ref, fc_b_ref,
     last_w_ref, last_b_ref, out_ref) = rest[2 * num_layers:]

    BL = B * L
    N = 2 * BL                    # stacked rows: [a1_b0; a1_b1; a2_b0; a2_b1]
    V = we_ref.shape[0]

    # ---- hoisted constant index masks (reused by every layer) ---------------
    row_is_a1_C = lax.broadcasted_iota(jnp.int32, (N, C), 0) < BL
    row_is_a1_2C = lax.broadcasted_iota(jnp.int32, (N, 2 * C), 0) < BL
    iota_lc = lax.broadcasted_iota(jnp.int32, (L, C), 0)
    lmod = jnp.broadcast_to(iota_lc, (2 * B, L, C)).reshape(N, C)  # pos in seq
    tk_iota = jnp.broadcast_to(iota_lc, (2 * B, L, C))

    # ---- embedding lookup: one-hot (VPU compare) -> single MXU push ---------
    onehot = (lax.broadcasted_iota(jnp.int32, (N, V), 1) == ids_ref[...]
              ).astype(jnp.float32)
    x = jnp.dot(onehot, we_ref[...].astype(jnp.float32),
                preferred_element_type=jnp.float32)               # (N, C)

    # ---- CNNLayer: Conv1d('same', odd K) -> GLU -> residual, a1+a2 fused ----
    def conv_glu(x, w12, b12):
        # x (N, C); w12 (K*C, 4C) = [w1 | w2]; b12 (1, 4C) = [b1 | b2]
        K = w12.shape[0] // C
        pad = K // 2
        taps = []
        for dk in range(K):
            shift = dk - pad              # tap[l] = x[l + shift], 0 outside seq
            if shift == 0:
                taps.append(x)
            else:
                rolled = jnp.concatenate([x[shift:], x[:shift]], axis=0)
                valid = lmod < (L - shift) if shift > 0 else lmod >= (-shift)
                taps.append(jnp.where(valid, rolled, 0.0))
        lhs = jnp.concatenate(taps, axis=1)                        # (N, K*C)
        acc = jnp.dot(lhs, w12, preferred_element_type=jnp.float32) + b12
        half = jnp.where(row_is_a1_2C, acc[:, :2 * C], acc[:, 2 * C:])
        return half[:, :C] * jax.nn.sigmoid(half[:, C:]) + x

    # ---- torch.topk(x, k, dim=1)[0].view(B, -1) over the L axis -------------
    def topk_rows(t):                     # (2B, L, C) -> (2B, k*C)
        cur = t
        pieces = []
        for _ in range(topk):             # static unroll (small k)
            m = jnp.max(cur, axis=1, keepdims=True)
            first = jnp.min(jnp.where(cur == m, tk_iota, L), axis=1,
                            keepdims=True)
            pieces.append(m[:, 0, :])
            cur = jnp.where(tk_iota == first, -jnp.inf, cur)
        return jnp.concatenate(pieces, axis=1)

    attn_w = attn_w_ref[...]
    attn_b = attn_b_ref[...]
    amask = amask_ref[...]                # 0 on the 8x8 block diagonal, -1e30 off
    inv_temper = 1.0 / (float(C) ** 0.5)

    pair_cols = []
    for i in range(num_layers):
        x = conv_glu(x, layer_refs[2 * i][...], layer_refs[2 * i + 1][...])

        # Atten(q=a1, v=a2): attn and attn^T for both batch elements packed
        # into one block-diagonal score matrix; vr/qr fall out of one context
        # push.  The [B,L,L] attention map is never consumed downstream.
        q_all = jnp.dot(x, attn_w, preferred_element_type=jnp.float32) + attn_b
        s_lhs = jnp.where(row_is_a1_C, q_all, x)   # [q_b0; q_b1; a2_b0; a2_b1]
        s_rhs = pltpu.roll(s_lhs, BL, 0)           # [a2_b0; a2_b1; q_b0; q_b1]
        v_stk = pltpu.roll(x, BL, 0)               # [a2_b0; a2_b1; a1_b0; a1_b1]

        scores = lax.dot_general(s_lhs, s_rhs, (((1,), (1,)), ((), ())),
                                 preferred_element_type=jnp.float32)
        scores = scores * inv_temper + amask
        m = jnp.max(scores, axis=-1, keepdims=True)
        e = jnp.exp(scores - m)
        p = e / jnp.sum(e, axis=-1, keepdims=True)
        ctx = jnp.dot(p, v_stk, preferred_element_type=jnp.float32)
        # ctx rows: [vr_b0; vr_b1; qr_b0; qr_b1]

        t = topk_rows(ctx.reshape(2 * B, L, C))    # (2B, k*C)
        pair_cols.append(jnp.concatenate([t[B:, :], t[:B, :]], axis=1))

    # ---- Classifier: fc -> tanh -> lastfc (dropouts identity at eval) -------
    pair = jnp.concatenate(pair_cols, axis=1)      # (B, pair_rep_dim)
    h = jnp.tanh(jnp.dot(pair, fc_w_ref[...],
                         preferred_element_type=jnp.float32) + fc_b_ref[...])
    logits = jnp.dot(h, last_w_ref[...],
                     preferred_element_type=jnp.float32) + last_b_ref[...]
    out_ref[...] = logits.astype(out_ref.dtype)


# ------------------------------ wrapper --------------------------------------

def idrc_forward(params, idx, arg1, arg2):
    del idx  # only used by the (disabled) MemoryBank branch
    we = params["we"]
    C = we.shape[1]
    B, L = arg1.shape
    N = 2 * B * L
    num_layers = len(params["block1"])
    topk = params["attn_topk"]
    nclass = params["last_w"].shape[1]

    # Stack both arguments' token ids into one (2BL, 1) int32 vector (VMEM).
    ids = jnp.concatenate([arg1.reshape(-1), arg2.reshape(-1)]
                          ).astype(jnp.int32).reshape(N, 1)

    # Constant metadata (in a serving path this is packed once at load time):
    # block-diagonal additive mask and im2col-fused conv weights [w1 | w2].
    blk = jnp.arange(N, dtype=jnp.int32) // L
    amask = jnp.where(blk[:, None] == blk[None, :], 0.0, -1e30
                      ).astype(jnp.float32)

    layer_args = []
    for i in range(num_layers):
        w1, b1 = params["block1"][i]
        w2, b2 = params["block2"][i]
        K = w1.shape[0]
        assert K % 2 == 1  # TODO(synk): even kernel sizes (PyTorch trims tmp[:,:,1:]) not implemented
        layer_args.append(jnp.concatenate(
            [w1.reshape(K * C, 2 * C), w2.reshape(K * C, 2 * C)], axis=1))
        layer_args.append(jnp.concatenate([b1, b2], axis=1))

    vmem = pl.BlockSpec(memory_space=pltpu.MemorySpace.VMEM)
    kern = functools.partial(fused_idrc_kernel, num_layers=num_layers,
                             topk=topk, B=B, L=L, C=C)
    return pl.pallas_call(
        kern,
        out_shape=jax.ShapeDtypeStruct((B, nclass), we.dtype),
        in_specs=[vmem] * (3 + 2 * num_layers + 6),
        out_specs=vmem,
    )(ids, we, amask, *layer_args,
      params["attn_w"], params["attn_b"],
      params["fc_w"], params["fc_b"],
      params["last_w"], params["last_b"])


# --------------------------- pure-JAX reference ------------------------------

def reference_forward(params, idx, arg1, arg2):
    del idx
    we = params["we"]

    def cnn_ref(x, w, b):
        B, L, C = x.shape
        K = w.shape[0]
        xp = jnp.pad(x, ((0, 0), (K // 2, K // 2), (0, 0)))
        out = jnp.zeros((B, L, 2 * C), jnp.float32) + b[None]
        for dk in range(K):
            out = out + jnp.einsum("blc,cd->bld", xp[:, dk:dk + L, :], w[dk])
        a, g = out[..., :C], out[..., C:]
        return a * jax.nn.sigmoid(g) + x

    def atten_ref(q, v, wq, bq, topk):
        B, L, D = q.shape
        q_ = jnp.einsum("bld,de->ble", q, wq) + bq[None]
        attn = jnp.einsum("bld,bmd->blm", q_, v) / (D ** 0.5)
        vr = jnp.einsum("blm,bmd->bld", jax.nn.softmax(attn, -1), v)
        qr = jnp.einsum("bml,bld->bmd",
                        jax.nn.softmax(attn.transpose(0, 2, 1), -1), q)
        vr_t = -jnp.sort(-vr, axis=1)[:, :topk, :].reshape(B, -1)
        qr_t = -jnp.sort(-qr, axis=1)[:, :topk, :].reshape(B, -1)
        return qr_t, vr_t

    a1, a2 = we[arg1], we[arg2]
    outs = []
    for i in range(len(params["block1"])):
        w1, b1 = params["block1"][i]
        w2, b2 = params["block2"][i]
        a1 = cnn_ref(a1, w1, b1)
        a2 = cnn_ref(a2, w2, b2)
        qr, vr = atten_ref(a1, a2, params["attn_w"], params["attn_b"],
                           params["attn_topk"])
        outs += [qr, vr]
    pair = jnp.concatenate(outs, axis=1)
    h = jnp.tanh(pair @ params["fc_w"] + params["fc_b"])
    return h @ params["last_w"] + params["last_b"]


# --------------------------------- main --------------------------------------

if __name__ == "__main__":
    B, L, D = 2, 8, 32
    VOCAB = 50
    NUM_LAYERS = 2
    KSIZES = (3, 3)
    TOPK = 2
    FC_DIM = 32
    NCLASS = 4
    PAIR_DIM = NUM_LAYERS * 2 * TOPK * D   # 256

    k_iter = iter(jax.random.split(jax.random.PRNGKey(0), 32))

    we = jax.random.normal(next(k_iter), (VOCAB, D), jnp.float32) * 0.1

    def conv_init(k, K, cin, cout):          # xavier-uniform-like
        bound = (6.0 / (cin * K + cout * K)) ** 0.5
        return jax.random.uniform(k, (K, cin, cout), jnp.float32, -bound, bound)

    block1, block2 = [], []
    for i in range(NUM_LAYERS):
        K = KSIZES[i]
        block1.append((conv_init(next(k_iter), K, D, 2 * D),
                       jnp.zeros((1, 2 * D), jnp.float32)))
        block2.append((conv_init(next(k_iter), K, D, 2 * D),
                       jnp.zeros((1, 2 * D), jnp.float32)))

    bnd = (1.0 / D) ** 0.5
    attn_w = jax.random.uniform(next(k_iter), (D, D), jnp.float32, -bnd, bnd)
    attn_b = jax.random.uniform(next(k_iter), (1, D), jnp.float32, -bnd, bnd)

    fc_w = jax.random.uniform(next(k_iter), (PAIR_DIM, FC_DIM), jnp.float32, -0.01, 0.01)
    fc_b = jnp.zeros((1, FC_DIM), jnp.float32)
    last_w = jax.random.uniform(next(k_iter), (FC_DIM, NCLASS), jnp.float32, -0.01, 0.01)
    last_b = jnp.zeros((1, NCLASS), jnp.float32)

    params = dict(we=we, block1=block1, block2=block2,
                  attn_w=attn_w, attn_b=attn_b, attn_topk=TOPK,
                  fc_w=fc_w, fc_b=fc_b, last_w=last_w, last_b=last_b)

    arg1 = jax.random.randint(next(k_iter), (B, L), 1, VOCAB)
    arg2 = jax.random.randint(next(k_iter), (B, L), 1, VOCAB)
    idx = jnp.arange(B)

    out = jax.block_until_ready(idrc_forward(params, idx, arg1, arg2))
    ref = reference_forward(params, idx, arg1, arg2)

    assert out.shape == (B, NCLASS), out.shape
    assert jnp.allclose(out, ref, rtol=1e-4, atol=1e-4), (out, ref)
    print("KERNEL_OK")
</pallas_src>

<mosaic_0001>
module attributes {stable_mosaic.version = 11 : i64} {
  func.func @fused_idrc_kernel(%arg0: memref<32x1xi32, #tpu.memory_space<vmem>>, %arg1: memref<50x32xf32, #tpu.memory_space<vmem>>, %arg2: memref<32x32xf32, #tpu.memory_space<vmem>>, %arg3: memref<96x128xf32, #tpu.memory_space<vmem>>, %arg4: memref<1x128xf32, #tpu.memory_space<vmem>>, %arg5: memref<96x128xf32, #tpu.memory_space<vmem>>, %arg6: memref<1x128xf32, #tpu.memory_space<vmem>>, %arg7: memref<32x32xf32, #tpu.memory_space<vmem>>, %arg8: memref<1x32xf32, #tpu.memory_space<vmem>>, %arg9: memref<256x32xf32, #tpu.memory_space<vmem>>, %arg10: memref<1x32xf32, #tpu.memory_space<vmem>>, %arg11: memref<32x4xf32, #tpu.memory_space<vmem>>, %arg12: memref<1x4xf32, #tpu.memory_space<vmem>>, %arg13: memref<2x4xf32, #tpu.memory_space<vmem>>) attributes {dimension_semantics = [], scalar_prefetch = 0 : i64, scratch_operands = 0 : i64, tpu.core_type = #tpu.core_type<tc>} {
    %0 = tpu.iota {dimensions = array<i32: 0>} : vector<32x32xi32>
    %c16_i32 = arith.constant 16 : i32
    %1 = vector.broadcast %c16_i32 : i32 to vector<32x32xi32>
    %2 = arith.cmpi slt, %0, %1 : vector<32x32xi32>
    %3 = tpu.iota {dimensions = array<i32: 0>} : vector<32x64xi32>
    %c16_i32_0 = arith.constant 16 : i32
    %4 = vector.broadcast %c16_i32_0 : i32 to vector<32x64xi32>
    %5 = arith.cmpi slt, %3, %4 : vector<32x64xi32>
    %6 = tpu.iota {dimensions = array<i32: 0>} : vector<8x32xi32>
    %7 = vector.shape_cast %6 : vector<8x32xi32> to vector<1x8x32xi32>
    %8 = vector.broadcast %7 : vector<1x8x32xi32> to vector<4x8x32xi32>
    %9 = vector.shape_cast %8 : vector<4x8x32xi32> to vector<32x32xi32>
    %10 = vector.shape_cast %6 : vector<8x32xi32> to vector<1x8x32xi32>
    %11 = vector.broadcast %10 : vector<1x8x32xi32> to vector<4x8x32xi32>
    %12 = tpu.iota {dimensions = array<i32: 1>} : vector<32x50xi32>
    %c0 = arith.constant 0 : index
    %c0_1 = arith.constant 0 : index
    %13 = vector.load %arg0[%c0, %c0_1] : memref<32x1xi32, #tpu.memory_space<vmem>>, vector<32x1xi32>
    %14 = vector.broadcast %13 : vector<32x1xi32> to vector<32x50xi32>
    %15 = arith.cmpi eq, %12, %14 : vector<32x50xi32>
    %16 = arith.extui %15 : vector<32x50xi1> to vector<32x50xi32>
    %17 = arith.sitofp %16 : vector<32x50xi32> to vector<32x50xf32>
    %c0_2 = arith.constant 0 : index
    %c0_3 = arith.constant 0 : index
    %18 = vector.load %arg1[%c0_2, %c0_3] : memref<50x32xf32, #tpu.memory_space<vmem>>, vector<50x32xf32>
    %cst = arith.constant dense<0.000000e+00> : vector<32x32xf32>
    %19 = tpu.matmul %17, %18, %cst {dimension_numbers = #tpu.dot_dimension_numbers<[1], [0], [0], [1], [0, 0, 1, 1], [], []>} : vector<32x50xf32>, vector<50x32xf32>, vector<32x32xf32> -> vector<32x32xf32>
    %c0_4 = arith.constant 0 : index
    %c0_5 = arith.constant 0 : index
    %20 = vector.load %arg7[%c0_4, %c0_5] : memref<32x32xf32, #tpu.memory_space<vmem>>, vector<32x32xf32>
    %c0_6 = arith.constant 0 : index
    %c0_7 = arith.constant 0 : index
    %21 = vector.load %arg8[%c0_6, %c0_7] : memref<1x32xf32, #tpu.memory_space<vmem>>, vector<1x32xf32>
    %c0_8 = arith.constant 0 : index
    %c0_9 = arith.constant 0 : index
    %22 = vector.load %arg2[%c0_8, %c0_9] : memref<32x32xf32, #tpu.memory_space<vmem>>, vector<32x32xf32>
    %c0_10 = arith.constant 0 : index
    %c0_11 = arith.constant 0 : index
    %23 = vector.load %arg3[%c0_10, %c0_11] : memref<96x128xf32, #tpu.memory_space<vmem>>, vector<96x128xf32>
    %c0_12 = arith.constant 0 : index
    %c0_13 = arith.constant 0 : index
    %24 = vector.load %arg4[%c0_12, %c0_13] : memref<1x128xf32, #tpu.memory_space<vmem>>, vector<1x128xf32>
    %25 = vector.extract_strided_slice %19 {offsets = [31, 0], sizes = [1, 32], strides = [1, 1]} : vector<32x32xf32> to vector<1x32xf32>
    %26 = vector.extract_strided_slice %19 {offsets = [0, 0], sizes = [31, 32], strides = [1, 1]} : vector<32x32xf32> to vector<31x32xf32>
    %27 = tpu.concatenate %25, %26 in 0 : vector<1x32xf32>, vector<31x32xf32> -> vector<32x32xf32>
    %c1_i32 = arith.constant 1 : i32
    %28 = vector.broadcast %c1_i32 : i32 to vector<32x32xi32>
    %29 = arith.cmpi sge, %9, %28 : vector<32x32xi32>
    %cst_14 = arith.constant 0.000000e+00 : f32
    %30 = vector.broadcast %cst_14 : f32 to vector<32x32xf32>
    %31 = arith.select %29, %27, %30 : vector<32x32xi1>, vector<32x32xf32>
    %32 = vector.extract_strided_slice %19 {offsets = [1, 0], sizes = [31, 32], strides = [1, 1]} : vector<32x32xf32> to vector<31x32xf32>
    %33 = vector.extract_strided_slice %19 {offsets = [0, 0], sizes = [1, 32], strides = [1, 1]} : vector<32x32xf32> to vector<1x32xf32>
    %34 = tpu.concatenate %32, %33 in 0 : vector<31x32xf32>, vector<1x32xf32> -> vector<32x32xf32>
    %c7_i32 = arith.constant 7 : i32
    %35 = vector.broadcast %c7_i32 : i32 to vector<32x32xi32>
    %36 = arith.cmpi slt, %9, %35 : vector<32x32xi32>
    %cst_15 = arith.constant 0.000000e+00 : f32
    %37 = vector.broadcast %cst_15 : f32 to vector<32x32xf32>
    %38 = arith.select %36, %34, %37 : vector<32x32xi1>, vector<32x32xf32>
    %39 = tpu.concatenate %31, %19, %38 in 1 : vector<32x32xf32>, vector<32x32xf32>, vector<32x32xf32> -> vector<32x96xf32>
    %cst_16 = arith.constant dense<0.000000e+00> : vector<32x128xf32>
    %40 = tpu.matmul %39, %23, %cst_16 {dimension_numbers = #tpu.dot_dimension_numbers<[1], [0], [0], [1], [0, 0, 1, 1], [], []>} : vector<32x96xf32>, vector<96x128xf32>, vector<32x128xf32> -> vector<32x128xf32>
    %41 = vector.broadcast %24 : vector<1x128xf32> to vector<32x128xf32>
    %42 = arith.addf %40, %41 : vector<32x128xf32>
    %43 = vector.extract_strided_slice %42 {offsets = [0, 0], sizes = [32, 64], strides = [1, 1]} : vector<32x128xf32> to vector<32x64xf32>
    %44 = vector.extract_strided_slice %42 {offsets = [0, 64], sizes = [32, 64], strides = [1, 1]} : vector<32x128xf32> to vector<32x64xf32>
    %45 = arith.select %5, %43, %44 : vector<32x64xi1>, vector<32x64xf32>
    %46 = vector.extract_strided_slice %45 {offsets = [0, 0], sizes = [32, 32], strides = [1, 1]} : vector<32x64xf32> to vector<32x32xf32>
    %47 = vector.extract_strided_slice %45 {offsets = [0, 32], sizes = [32, 32], strides = [1, 1]} : vector<32x64xf32> to vector<32x32xf32>
    %48 = arith.negf %47 : vector<32x32xf32>
    %49 = math.exp %48 : vector<32x32xf32>
    %cst_17 = arith.constant 1.000000e+00 : f32
    %50 = vector.broadcast %cst_17 : f32 to vector<32x32xf32>
    %51 = arith.addf %50, %49 : vector<32x32xf32>
    %52 = arith.divf %50, %51 : vector<32x32xf32>
    %53 = arith.mulf %46, %52 : vector<32x32xf32>
    %54 = arith.addf %53, %19 : vector<32x32xf32>
    %cst_18 = arith.constant dense<0.000000e+00> : vector<32x32xf32>
    %55 = tpu.matmul %54, %20, %cst_18 {dimension_numbers = #tpu.dot_dimension_numbers<[1], [0], [0], [1], [0, 0, 1, 1], [], []>} : vector<32x32xf32>, vector<32x32xf32>, vector<32x32xf32> -> vector<32x32xf32>
    %56 = vector.broadcast %21 : vector<1x32xf32> to vector<32x32xf32>
    %57 = arith.addf %55, %56 : vector<32x32xf32>
    %58 = arith.select %2, %57, %54 : vector<32x32xi1>, vector<32x32xf32>
    %c16_i32_19 = arith.constant 16 : i32
    %59 = tpu.dynamic_rotate %58 by %c16_i32_19 dim 0 : vector<32x32xf32>, i32 -> vector<32x32xf32>
    %c16_i32_20 = arith.constant 16 : i32
    %60 = tpu.dynamic_rotate %54 by %c16_i32_20 dim 0 : vector<32x32xf32>, i32 -> vector<32x32xf32>
    %cst_21 = arith.constant dense<0.000000e+00> : vector<32x32xf32>
    %61 = tpu.matmul %58, %59, %cst_21 {dimension_numbers = #tpu.dot_dimension_numbers<[1], [1], [0], [0], [0, 0, 1, 0], [], []>} : vector<32x32xf32>, vector<32x32xf32>, vector<32x32xf32> -> vector<32x32xf32>
    %cst_22 = arith.constant 0.176776692 : f32
    %62 = vector.broadcast %cst_22 : f32 to vector<32x32xf32>
    %63 = arith.mulf %61, %62 : vector<32x32xf32>
    %64 = arith.addf %63, %22 : vector<32x32xf32>
    %cst_23 = arith.constant dense<0xFF800000> : vector<32xf32>
    %65 = vector.multi_reduction <maximumf>, %64, %cst_23 [1] : vector<32x32xf32> to vector<32xf32>
    %66 = vector.shape_cast %65 : vector<32xf32> to vector<32x1xf32>
    %67 = vector.broadcast %66 : vector<32x1xf32> to vector<32x32xf32>
    %68 = arith.subf %64, %67 : vector<32x32xf32>
    %69 = math.exp %68 : vector<32x32xf32>
    %cst_24 = arith.constant dense<0.000000e+00> : vector<32xf32>
    %70 = vector.multi_reduction <add>, %69, %cst_24 [1] : vector<32x32xf32> to vector<32xf32>
    %71 = vector.shape_cast %70 : vector<32xf32> to vector<32x1xf32>
    %72 = vector.broadcast %71 : vector<32x1xf32> to vector<32x32xf32>
    %73 = arith.divf %69, %72 : vector<32x32xf32>
    %cst_25 = arith.constant dense<0.000000e+00> : vector<32x32xf32>
    %74 = tpu.matmul %73, %60, %cst_25 {dimension_numbers = #tpu.dot_dimension_numbers<[1], [0], [0], [1], [0, 0, 1, 1], [], []>} : vector<32x32xf32>, vector<32x32xf32>, vector<32x32xf32> -> vector<32x32xf32>
    %75 = vector.shape_cast %74 : vector<32x32xf32> to vector<4x8x32xf32>
    %cst_26 = arith.constant dense<0xFF800000> : vector<4x32xf32>
    %76 = vector.multi_reduction <maximumf>, %75, %cst_26 [1] : vector<4x8x32xf32> to vector<4x32xf32>
    %77 = vector.shape_cast %76 : vector<4x32xf32> to vector<4x1x32xf32>
    %78 = vector.broadcast %77 : vector<4x1x32xf32> to vector<4x8x32xf32>
    %79 = arith.cmpf oeq, %75, %78 : vector<4x8x32xf32>
    %c8_i32 = arith.constant 8 : i32
    %80 = vector.broadcast %c8_i32 : i32 to vector<4x8x32xi32>
    %81 = arith.select %79, %11, %80 : vector<4x8x32xi1>, vector<4x8x32xi32>
    %cst_27 = arith.constant dense<2147483647> : vector<4x32xi32>
    %82 = vector.multi_reduction <minsi>, %81, %cst_27 [1] : vector<4x8x32xi32> to vector<4x32xi32>
    %83 = vector.shape_cast %82 : vector<4x32xi32> to vector<4x1x32xi32>
    %84 = vector.shape_cast %77 : vector<4x1x32xf32> to vector<4x32xf32>
    %85 = vector.broadcast %83 : vector<4x1x32xi32> to vector<4x8x32xi32>
    %86 = arith.cmpi eq, %11, %85 : vector<4x8x32xi32>
    %cst_28 = arith.constant 0xFF800000 : f32
    %87 = vector.broadcast %cst_28 : f32 to vector<4x8x32xf32>
    %88 = arith.select %86, %87, %75 : vector<4x8x32xi1>, vector<4x8x32xf32>
    %cst_29 = arith.constant dense<0xFF800000> : vector<4x32xf32>
    %89 = vector.multi_reduction <maximumf>, %88, %cst_29 [1] : vector<4x8x32xf32> to vector<4x32xf32>
    %90 = vector.shape_cast %89 : vector<4x32xf32> to vector<4x1x32xf32>
    %91 = vector.shape_cast %90 : vector<4x1x32xf32> to vector<4x32xf32>
    %92 = tpu.concatenate %84, %91 in 1 : vector<4x32xf32>, vector<4x32xf32> -> vector<4x64xf32>
    %93 = vector.extract_strided_slice %92 {offsets = [2, 0], sizes = [2, 64], strides = [1, 1]} : vector<4x64xf32> to vector<2x64xf32>
    %94 = vector.extract_strided_slice %92 {offsets = [0, 0], sizes = [2, 64], strides = [1, 1]} : vector<4x64xf32> to vector<2x64xf32>
    %95 = tpu.concatenate %93, %94 in 1 : vector<2x64xf32>, vector<2x64xf32> -> vector<2x128xf32>
    %c0_30 = arith.constant 0 : index
    %c0_31 = arith.constant 0 : index
    %96 = vector.load %arg5[%c0_30, %c0_31] : memref<96x128xf32, #tpu.memory_space<vmem>>, vector<96x128xf32>
    %c0_32 = arith.constant 0 : index
    %c0_33 = arith.constant 0 : index
    %97 = vector.load %arg6[%c0_32, %c0_33] : memref<1x128xf32, #tpu.memory_space<vmem>>, vector<1x128xf32>
    %98 = vector.extract_strided_slice %54 {offsets = [31, 0], sizes = [1, 32], strides = [1, 1]} : vector<32x32xf32> to vector<1x32xf32>
    %99 = vector.extract_strided_slice %54 {offsets = [0, 0], sizes = [31, 32], strides = [1, 1]} : vector<32x32xf32> to vector<31x32xf32>
    %100 = tpu.concatenate %98, %99 in 0 : vector<1x32xf32>, vector<31x32xf32> -> vector<32x32xf32>
    %c1_i32_34 = arith.constant 1 : i32
    %101 = vector.broadcast %c1_i32_34 : i32 to vector<32x32xi32>
    %102 = arith.cmpi sge, %9, %101 : vector<32x32xi32>
    %cst_35 = arith.constant 0.000000e+00 : f32
    %103 = vector.broadcast %cst_35 : f32 to vector<32x32xf32>
    %104 = arith.select %102, %100, %103 : vector<32x32xi1>, vector<32x32xf32>
    %105 = vector.extract_strided_slice %54 {offsets = [1, 0], sizes = [31, 32], strides = [1, 1]} : vector<32x32xf32> to vector<31x32xf32>
    %106 = vector.extract_strided_slice %54 {offsets = [0, 0], sizes = [1, 32], strides = [1, 1]} : vector<32x32xf32> to vector<1x32xf32>
    %107 = tpu.concatenate %105, %106 in 0 : vector<31x32xf32>, vector<1x32xf32> -> vector<32x32xf32>
    %c7_i32_36 = arith.constant 7 : i32
    %108 = vector.broadcast %c7_i32_36 : i32 to vector<32x32xi32>
    %109 = arith.cmpi slt, %9, %108 : vector<32x32xi32>
    %cst_37 = arith.constant 0.000000e+00 : f32
    %110 = vector.broadcast %cst_37 : f32 to vector<32x32xf32>
    %111 = arith.select %109, %107, %110 : vector<32x32xi1>, vector<32x32xf32>
    %112 = tpu.concatenate %104, %54, %111 in 1 : vector<32x32xf32>, vector<32x32xf32>, vector<32x32xf32> -> vector<32x96xf32>
    %cst_38 = arith.constant dense<0.000000e+00> : vector<32x128xf32>
    %113 = tpu.matmul %112, %96, %cst_38 {dimension_numbers = #tpu.dot_dimension_numbers<[1], [0], [0], [1], [0, 0, 1, 1], [], []>} : vector<32x96xf32>, vector<96x128xf32>, vector<32x128xf32> -> vector<32x128xf32>
    %114 = vector.broadcast %97 : vector<1x128xf32> to vector<32x128xf32>
    %115 = arith.addf %113, %114 : vector<32x128xf32>
    %116 = vector.extract_strided_slice %115 {offsets = [0, 0], sizes = [32, 64], strides = [1, 1]} : vector<32x128xf32> to vector<32x64xf32>
    %117 = vector.extract_strided_slice %115 {offsets = [0, 64], sizes = [32, 64], strides = [1, 1]} : vector<32x128xf32> to vector<32x64xf32>
    %118 = arith.select %5, %116, %117 : vector<32x64xi1>, vector<32x64xf32>
    %119 = vector.extract_strided_slice %118 {offsets = [0, 0], sizes = [32, 32], strides = [1, 1]} : vector<32x64xf32> to vector<32x32xf32>
    %120 = vector.extract_strided_slice %118 {offsets = [0, 32], sizes = [32, 32], strides = [1, 1]} : vector<32x64xf32> to vector<32x32xf32>
    %121 = arith.negf %120 : vector<32x32xf32>
    %122 = math.exp %121 : vector<32x32xf32>
    %cst_39 = arith.constant 1.000000e+00 : f32
    %123 = vector.broadcast %cst_39 : f32 to vector<32x32xf32>
    %124 = arith.addf %123, %122 : vector<32x32xf32>
    %125 = arith.divf %123, %124 : vector<32x32xf32>
    %126 = arith.mulf %119, %125 : vector<32x32xf32>
    %127 = arith.addf %126, %54 : vector<32x32xf32>
    %cst_40 = arith.constant dense<0.000000e+00> : vector<32x32xf32>
    %128 = tpu.matmul %127, %20, %cst_40 {dimension_numbers = #tpu.dot_dimension_numbers<[1], [0], [0], [1], [0, 0, 1, 1], [], []>} : vector<32x32xf32>, vector<32x32xf32>, vector<32x32xf32> -> vector<32x32xf32>
    %129 = vector.broadcast %21 : vector<1x32xf32> to vector<32x32xf32>
    %130 = arith.addf %128, %129 : vector<32x32xf32>
    %131 = arith.select %2, %130, %127 : vector<32x32xi1>, vector<32x32xf32>
    %c16_i32_41 = arith.constant 16 : i32
    %132 = tpu.dynamic_rotate %131 by %c16_i32_41 dim 0 : vector<32x32xf32>, i32 -> vector<32x32xf32>
    %c16_i32_42 = arith.constant 16 : i32
    %133 = tpu.dynamic_rotate %127 by %c16_i32_42 dim 0 : vector<32x32xf32>, i32 -> vector<32x32xf32>
    %cst_43 = arith.constant dense<0.000000e+00> : vector<32x32xf32>
    %134 = tpu.matmul %131, %132, %cst_43 {dimension_numbers = #tpu.dot_dimension_numbers<[1], [1], [0], [0], [0, 0, 1, 0], [], []>} : vector<32x32xf32>, vector<32x32xf32>, vector<32x32xf32> -> vector<32x32xf32>
    %cst_44 = arith.constant 0.176776692 : f32
    %135 = vector.broadcast %cst_44 : f32 to vector<32x32xf32>
    %136 = arith.mulf %134, %135 : vector<32x32xf32>
    %137 = arith.addf %136, %22 : vector<32x32xf32>
    %cst_45 = arith.constant dense<0xFF800000> : vector<32xf32>
    %138 = vector.multi_reduction <maximumf>, %137, %cst_45 [1] : vector<32x32xf32> to vector<32xf32>
    %139 = vector.shape_cast %138 : vector<32xf32> to vector<32x1xf32>
    %140 = vector.broadcast %139 : vector<32x1xf32> to vector<32x32xf32>
    %141 = arith.subf %137, %140 : vector<32x32xf32>
    %142 = math.exp %141 : vector<32x32xf32>
    %cst_46 = arith.constant dense<0.000000e+00> : vector<32xf32>
    %143 = vector.multi_reduction <add>, %142, %cst_46 [1] : vector<32x32xf32> to vector<32xf32>
    %144 = vector.shape_cast %143 : vector<32xf32> to vector<32x1xf32>
    %145 = vector.broadcast %144 : vector<32x1xf32> to vector<32x32xf32>
    %146 = arith.divf %142, %145 : vector<32x32xf32>
    %cst_47 = arith.constant dense<0.000000e+00> : vector<32x32xf32>
    %147 = tpu.matmul %146, %133, %cst_47 {dimension_numbers = #tpu.dot_dimension_numbers<[1], [0], [0], [1], [0, 0, 1, 1], [], []>} : vector<32x32xf32>, vector<32x32xf32>, vector<32x32xf32> -> vector<32x32xf32>
    %148 = vector.shape_cast %147 : vector<32x32xf32> to vector<4x8x32xf32>
    %cst_48 = arith.constant dense<0xFF800000> : vector<4x32xf32>
    %149 = vector.multi_reduction <maximumf>, %148, %cst_48 [1] : vector<4x8x32xf32> to vector<4x32xf32>
    %150 = vector.shape_cast %149 : vector<4x32xf32> to vector<4x1x32xf32>
    %151 = vector.broadcast %150 : vector<4x1x32xf32> to vector<4x8x32xf32>
    %152 = arith.cmpf oeq, %148, %151 : vector<4x8x32xf32>
    %c8_i32_49 = arith.constant 8 : i32
    %153 = vector.broadcast %c8_i32_49 : i32 to vector<4x8x32xi32>
    %154 = arith.select %152, %11, %153 : vector<4x8x32xi1>, vector<4x8x32xi32>
    %cst_50 = arith.constant dense<2147483647> : vector<4x32xi32>
    %155 = vector.multi_reduction <minsi>, %154, %cst_50 [1] : vector<4x8x32xi32> to vector<4x32xi32>
    %156 = vector.shape_cast %155 : vector<4x32xi32> to vector<4x1x32xi32>
    %157 = vector.shape_cast %150 : vector<4x1x32xf32> to vector<4x32xf32>
    %158 = vector.broadcast %156 : vector<4x1x32xi32> to vector<4x8x32xi32>
    %159 = arith.cmpi eq, %11, %158 : vector<4x8x32xi32>
    %cst_51 = arith.constant 0xFF800000 : f32
    %160 = vector.broadcast %cst_51 : f32 to vector<4x8x32xf32>
    %161 = arith.select %159, %160, %148 : vector<4x8x32xi1>, vector<4x8x32xf32>
    %cst_52 = arith.constant dense<0xFF800000> : vector<4x32xf32>
    %162 = vector.multi_reduction <maximumf>, %161, %cst_52 [1] : vector<4x8x32xf32> to vector<4x32xf32>
    %163 = vector.shape_cast %162 : vector<4x32xf32> to vector<4x1x32xf32>
    %164 = vector.shape_cast %163 : vector<4x1x32xf32> to vector<4x32xf32>
    %165 = tpu.concatenate %157, %164 in 1 : vector<4x32xf32>, vector<4x32xf32> -> vector<4x64xf32>
    %166 = vector.extract_strided_slice %165 {offsets = [2, 0], sizes = [2, 64], strides = [1, 1]} : vector<4x64xf32> to vector<2x64xf32>
    %167 = vector.extract_strided_slice %165 {offsets = [0, 0], sizes = [2, 64], strides = [1, 1]} : vector<4x64xf32> to vector<2x64xf32>
    %168 = tpu.concatenate %166, %167 in 1 : vector<2x64xf32>, vector<2x64xf32> -> vector<2x128xf32>
    %169 = tpu.concatenate %95, %168 in 1 : vector<2x128xf32>, vector<2x128xf32> -> vector<2x256xf32>
    %c0_53 = arith.constant 0 : index
    %c0_54 = arith.constant 0 : index
    %170 = vector.load %arg9[%c0_53, %c0_54] : memref<256x32xf32, #tpu.memory_space<vmem>>, vector<256x32xf32>
    %cst_55 = arith.constant dense<0.000000e+00> : vector<2x32xf32>
    %171 = tpu.matmul %169, %170, %cst_55 {dimension_numbers = #tpu.dot_dimension_numbers<[1], [0], [0], [1], [0, 0, 1, 1], [], []>} : vector<2x256xf32>, vector<256x32xf32>, vector<2x32xf32> -> vector<2x32xf32>
    %c0_56 = arith.constant 0 : index
    %c0_57 = arith.constant 0 : index
    %172 = vector.load %arg10[%c0_56, %c0_57] : memref<1x32xf32, #tpu.memory_space<vmem>>, vector<1x32xf32>
    %173 = vector.broadcast %172 : vector<1x32xf32> to vector<2x32xf32>
    %174 = arith.addf %171, %173 : vector<2x32xf32>
    %175 = math.tanh %174 : vector<2x32xf32>
    %c0_58 = arith.constant 0 : index
    %c0_59 = arith.constant 0 : index
    %176 = vector.load %arg11[%c0_58, %c0_59] : memref<32x4xf32, #tpu.memory_space<vmem>>, vector<32x4xf32>
    %cst_60 = arith.constant dense<0.000000e+00> : vector<2x4xf32>
    %177 = tpu.matmul %175, %176, %cst_60 {dimension_numbers = #tpu.dot_dimension_numbers<[1], [0], [0], [1], [0, 0, 1, 1], [], []>} : vector<2x32xf32>, vector<32x4xf32>, vector<2x4xf32> -> vector<2x4xf32>
    %c0_61 = arith.constant 0 : index
    %c0_62 = arith.constant 0 : index
    %178 = vector.load %arg12[%c0_61, %c0_62] : memref<1x4xf32, #tpu.memory_space<vmem>>, vector<1x4xf32>
    %179 = vector.broadcast %178 : vector<1x4xf32> to vector<2x4xf32>
    %180 = arith.addf %177, %179 : vector<2x4xf32>
    %c0_63 = arith.constant 0 : index
    %c0_64 = arith.constant 0 : index
    %181 = vector.load %arg13[%c0_63, %c0_64] : memref<2x4xf32, #tpu.memory_space<vmem>>, vector<2x4xf32>
    tpu.vector_store %arg13[%c0_63, %c0_64], %180 {strides = array<i32>} : memref<2x4xf32, #tpu.memory_space<vmem>>, vector<2x4xf32>,
    return
  }
}

</mosaic_0001>

<llo_original>
// kernel: tpu_custom_call.1
$region0: #{tpu_custom_call.1}
  #allocation0 [shape = 'u32[]', space=smem, size = 0x4, offset = 0x4, fixed_abs, tag = 'smem constant byte address 0x4 - core index']
  #allocation1 [shape = 'u32[144,128]{1,0:T(1,128)}', space=vmem, size = 0x12000, scoped, tag = 'internal scratch']
  %s0 = inlined_call_operand.vmem [shape: s32[32,1], index: 0, kind: input, shape index: {}]
  %s1 = inlined_call_operand.vmem [shape: f32[50,32], index: 1, kind: input, shape index: {}]
  %s2 = inlined_call_operand.vmem [shape: f32[32,32], index: 2, kind: input, shape index: {}]
  %s3 = inlined_call_operand.vmem [shape: f32[96,128], index: 3, kind: input, shape index: {}]
  %s4 = inlined_call_operand.vmem [shape: f32[1,128], index: 4, kind: input, shape index: {}]
  %s5 = inlined_call_operand.vmem [shape: f32[96,128], index: 5, kind: input, shape index: {}]
  %s6 = inlined_call_operand.vmem [shape: f32[1,128], index: 6, kind: input, shape index: {}]
  %s7 = inlined_call_operand.vmem [shape: f32[32,32], index: 7, kind: input, shape index: {}]
  %s8 = inlined_call_operand.vmem [shape: f32[1,32], index: 8, kind: input, shape index: {}]
  %s9 = inlined_call_operand.vmem [shape: f32[256,32], index: 9, kind: input, shape index: {}]
  %s10 = inlined_call_operand.vmem [shape: f32[1,32], index: 10, kind: input, shape index: {}]
  %s11 = inlined_call_operand.vmem [shape: f32[32,4], index: 11, kind: input, shape index: {}]
  %s12 = inlined_call_operand.vmem [shape: f32[1,4], index: 12, kind: input, shape index: {}]
  %s13 = inlined_call_operand.hbm [shape: f32[2,4], index: 13, kind: output, shape index: {}]
  %s14 = sld [smem:[#allocation0]]
  $region62: #{tpu_custom_call.1} parent=0
    _
  %s16 = ssub.s32 1, %s14
  %s17 = scalar_select 0, %s16, %s14
  $region1: #{tpu_custom_call.1} parent=0
    #allocation2 [shape = 'u8[1024]{0}', space=vmem, size = 0x400, scoped, tag = 'output window, operand 0, single buffered']
    #allocation3 [shape = 's32[1]{0}', space=sflag, size = 0x4, scoped, tag = 'scoped memory for tpu_custom_call.1']
    %18 = vsyncpa [#allocation3], 0
    // Predicated region
    $region2: #{tpu_custom_call.1} parent=1 // pred_check
      _
    $region3: #{tpu_custom_call.1} parent=1 // pred_check_branch
      %20 = sbr.rel (0) target = $region5
    $region4: #{tpu_custom_call.1} parent=1 // pred_region
      _
    $region5: #{tpu_custom_call.1} parent=1 // pred_fallthru
      _
    // Predicated region
    $region6: #{tpu_custom_call.1} parent=1 // pred_check
      _
    $region7: #{tpu_custom_call.1} parent=1 // pred_check_branch
      %22 = sbr.rel (0) target = $region9
    $region8: #{tpu_custom_call.1} parent=1 // pred_region
      _
    $region9: #{tpu_custom_call.1} parent=1 // pred_fallthru
      _
    // Predicated region
    $region10: #{tpu_custom_call.1} parent=1 // pred_check
      _
    $region11: #{tpu_custom_call.1} parent=1 // pred_check_branch
      %24 = sbr.rel (0) target = $region13
    $region12: #{tpu_custom_call.1} parent=1 // pred_region
      _
    $region13: #{tpu_custom_call.1} parent=1 // pred_fallthru
      _
    // Predicated region
    $region14: #{tpu_custom_call.1} parent=1 // pred_check
      _
    $region15: #{tpu_custom_call.1} parent=1 // pred_check_branch
      %26 = sbr.rel (0) target = $region17
    $region16: #{tpu_custom_call.1} parent=1 // pred_region
      _
    $region17: #{tpu_custom_call.1} parent=1 // pred_fallthru
      _
    // Predicated region
    $region18: #{tpu_custom_call.1} parent=1 // pred_check
      _
    $region19: #{tpu_custom_call.1} parent=1 // pred_check_branch
      %28 = sbr.rel (0) target = $region21
    $region20: #{tpu_custom_call.1} parent=1 // pred_region
      _
    $region21: #{tpu_custom_call.1} parent=1 // pred_fallthru
      _
    // Predicated region
    $region22: #{tpu_custom_call.1} parent=1 // pred_check
      _
    $region23: #{tpu_custom_call.1} parent=1 // pred_check_branch
      %30 = sbr.rel (0) target = $region25
    $region24: #{tpu_custom_call.1} parent=1 // pred_region
      _
    $region25: #{tpu_custom_call.1} parent=1 // pred_fallthru
      _
    // Predicated region
    $region26: #{tpu_custom_call.1} parent=1 // pred_check
      _
    $region27: #{tpu_custom_call.1} parent=1 // pred_check_branch
      %32 = sbr.rel (0) target = $region29
    $region28: #{tpu_custom_call.1} parent=1 // pred_region
      _
    $region29: #{tpu_custom_call.1} parent=1 // pred_fallthru
      _
    // Predicated region
    $region30: #{tpu_custom_call.1} parent=1 // pred_check
      _
    $region31: #{tpu_custom_call.1} parent=1 // pred_check_branch
      %34 = sbr.rel (0) target = $region33
    $region32: #{tpu_custom_call.1} parent=1 // pred_region
      _
    $region33: #{tpu_custom_call.1} parent=1 // pred_fallthru
      _
    // Predicated region
    $region34: #{tpu_custom_call.1} parent=1 // pred_check
      _
    $region35: #{tpu_custom_call.1} parent=1 // pred_check_branch
      %36 = sbr.rel (0) target = $region37
    $region36: #{tpu_custom_call.1} parent=1 // pred_region
      _
    $region37: #{tpu_custom_call.1} parent=1 // pred_fallthru
      _
    // Predicated region
    $region38: #{tpu_custom_call.1} parent=1 // pred_check
      _
    $region39: #{tpu_custom_call.1} parent=1 // pred_check_branch
      %38 = sbr.rel (0) target = $region41
    $region40: #{tpu_custom_call.1} parent=1 // pred_region
      _
    $region41: #{tpu_custom_call.1} parent=1 // pred_fallthru
      _
    // Predicated region
    $region42: #{tpu_custom_call.1} parent=1 // pred_check
      _
    $region43: #{tpu_custom_call.1} parent=1 // pred_check_branch
      %40 = sbr.rel (0) target = $region45
    $region44: #{tpu_custom_call.1} parent=1 // pred_region
      _
    $region45: #{tpu_custom_call.1} parent=1 // pred_fallthru
      _
    // Predicated region
    $region46: #{tpu_custom_call.1} parent=1 // pred_check
      _
    $region47: #{tpu_custom_call.1} parent=1 // pred_check_branch
      %42 = sbr.rel (0) target = $region49
    $region48: #{tpu_custom_call.1} parent=1 // pred_region
      _
    $region49: #{tpu_custom_call.1} parent=1 // pred_fallthru
      _
    // Predicated region
    $region50: #{tpu_custom_call.1} parent=1 // pred_check
      _
    $region51: #{tpu_custom_call.1} parent=1 // pred_check_branch
      %44 = sbr.rel (0) target = $region53
    $region52: #{tpu_custom_call.1} parent=1 // pred_region
      _
    $region53: #{tpu_custom_call.1} parent=1 // pred_fallthru
      _
    %v45 = vlaneseq
    %v46 = vshrl.u32 %v45, 7
    %v47 = vadd.s32 %v46, 8
    %v48 = vadd.s32 %v46, 16
    %v49 = vadd.s32 %v46, 24
    %vm50 = vcmp.lt.s32.totalorder %v46, 16
    %vm51 = vcmp.lt.s32.totalorder %v47, 16
    %vm52 = vcmp.lt.s32.totalorder %v48, 16
    %vm53 = vcmp.lt.s32.totalorder %v49, 16
    %v54 = vlaneseq
    %v55 = vand.u32 %v54, 127
    %v56 = vld [vmem:[%s0] sm:$0xff]
    %v57 = vld [vmem:[%s0 + $0x8] sm:$0xff]
    %v58 = vld [vmem:[%s0 + $0x10] sm:$0xff]
    %v59 = vld [vmem:[%s0 + $0x18] sm:$0xff]
    %60 = vset.pattern.permute.xlu0 0
    %61 = vperm.xlu0 %60, %v56
    %v62 = vpop.permute.xlu0 %61
    %63 = vset.pattern.permute.xlu0 0
    %64 = vperm.xlu0 %63, %v57
    %v65 = vpop.permute.xlu0 %64
    %66 = vset.pattern.permute.xlu0 0
    %67 = vperm.xlu0 %66, %v58
    %v68 = vpop.permute.xlu0 %67
    %69 = vset.pattern.permute.xlu0 0
    %70 = vperm.xlu0 %69, %v59
    %v71 = vpop.permute.xlu0 %70
    %vm72 = vcmp.eq.s32.totalorder %v55, %v62
    %vm73 = vcmp.eq.s32.totalorder %v55, %v65
    %vm74 = vcmp.eq.s32.totalorder %v55, %v68
    %vm75 = vcmp.eq.s32.totalorder %v55, %v71
    %v76 = vsel %vm72, 1, 0
    %v77 = vsel %vm73, 1, 0
    %v78 = vsel %vm74, 1, 0
    %v79 = vsel %vm75, 1, 0
    %v80 = vcvt.s32.f32 %v76
    %v81 = vcvt.s32.f32 %v77
    %v82 = vcvt.s32.f32 %v78
    %v83 = vcvt.s32.f32 %v79
    %v84 = vld [vmem:[%s1] sm:$0xff]
    %v85 = vld [vmem:[%s1 + $0x8] sm:$0xff]
    %v86 = vld [vmem:[%s1 + $0x10] sm:$0xff]
    %v87 = vld [vmem:[%s1 + $0x18] sm:$0xff]
    %v88 = vld [vmem:[%s1 + $0x20] sm:$0xff]
    %v89 = vld [vmem:[%s1 + $0x28] sm:$0xff]
    %v90 = vld [vmem:[%s1 + $0x30] sm:$0x3]
    %vm91 = vcmask 408576
    %v93 = vsel %vm91, %v80, 0
    %v96 = vsel %vm91, %v81, 0
    %v99 = vsel %vm91, %v82, 0
    %v102 = vsel %vm91, %v83, 0
    %vm104 = vcmask 1041408
    %v106 = vsel %vm104, %v90, 0
    %108 = vmatprep.subr.mxu0 0.0
    %109 = vmatpush1.msra.mxu0 %v84
    %110 = vmatprep.subr.mxu0 0.0
    %111 = vmatpush1.msra.mxu0 %v85
    %112 = vmatprep.subr.mxu0 0.0
    %113 = vmatpush1.msra.mxu0 %v86
    %114 = vmatprep.subr.mxu0 0.0
    %115 = vmatpush1.msra.mxu0 %v87
    %116 = vmatprep.subr.mxu0 0.0
    %117 = vmatpush1.msra.mxu0 %v88
    %118 = vmatprep.subr.mxu0 0.0
    %119 = vmatpush1.msra.mxu0 %v89
    %120 = vmatprep.subr.mxu0 0.0
    %121 = vmatpush1.msra.mxu0 %v106
    %122 = vmatprep.subr.mxu0 0.0
    %123 = vmatpush1.msra.mxu0 0.0
    %124 = vmatprep.subr.mxu0 0.0
    %125 = vmatpush1.msra.mxu0 0.0
    %126 = vmatprep.subr.mxu0 0.0
    %127 = vmatpush1.msra.mxu0 0.0
    %128 = vmatprep.subr.mxu0 0.0
    %129 = vmatpush1.msra.mxu0 0.0
    %130 = vmatprep.subr.mxu0 0.0
    %131 = vmatpush1.msra.mxu0 0.0
    %132 = vmatprep.subr.mxu0 0.0
    %133 = vmatpush1.msra.mxu0 0.0
    %134 = vmatprep.subr.mxu0 0.0
    %135 = vmatpush1.msra.mxu0 0.0
    %136 = vmatprep.subr.mxu0 0.0
    %137 = vmatpush1.msra.mxu0 0.0
    %138 = vmatprep.subr.mxu0 0.0
    %139 = vmatpush1.msra.mxu0 0.0
    %140 = vmatprep.subr.mxu0 0.0
    %141 = vmatpush1.msra.mxu0 0.0
    %142 = vmatprep.subr.mxu0 0.0
    %143 = vmatpush1.msra.mxu0 0.0
    %144 = vmatprep.subr.mxu0 0.0
    %145 = vmatpush1.msra.mxu0 0.0
    %146 = vmatprep.subr.mxu0 0.0
    %147 = vmatpush1.msra.mxu0 0.0
    %148 = vmatprep.subr.mxu0 0.0
    %149 = vmatpush1.msra.mxu0 0.0
    %150 = vmatprep.subr.mxu0 0.0
    %151 = vmatpush1.msra.mxu0 0.0
    %152 = vmatprep.subr.mxu0 0.0
    %153 = vmatpush1.msra.mxu0 0.0
    %154 = vmatprep.subr.mxu0 0.0
    %155 = vmatpush1.msra.mxu0 0.0
    %156 = vmatprep.subr.mxu0 0.0
    %157 = vmatpush1.msra.mxu0 0.0
    %158 = vmatprep.subr.mxu0 0.0
    %159 = vmatpush1.msra.mxu0 0.0
    %160 = vmatprep.subr.mxu0 0.0
    %161 = vmatpush1.msra.mxu0 0.0
    %162 = vmatprep.subr.mxu0 0.0
    %163 = vmatpush1.msra.mxu0 0.0
    %164 = vmatprep.subr.mxu0 0.0
    %165 = vmatpush1.msra.mxu0 0.0
    %166 = vmatprep.subr.mxu0 0.0
    %167 = vmatpush1.msra.mxu0 0.0
    %168 = vmatprep.subr.mxu0 0.0
    %169 = vmatpush1.msra.mxu0 0.0
    %170 = vmatprep.subr.mxu0 0.0
    %171 = vmatpush1.msra.mxu0 0.0
    %172 = vmatprep.mubr.f32.mxu0 0.0
    %173 = vmatmul.mubr.f32.gmra.mrb[0].mxu0 %v93
    %v174 = vpop.f32.mrb[0].mxu0
    %v175 = vadd.f32 0.0, %v174
    %v176 = vpop.f32.mrb[0].mxu0
    %177 = vmatprep.mubr.f32.mxu0 0.0
    %178 = vmatmul.mubr.f32.gmra.mrb[0].mxu0 %v96
    %v179 = vpop.f32.mrb[0].mxu0
    %v180 = vadd.f32 0.0, %v179
    %v181 = vpop.f32.mrb[0].mxu0
    %182 = vmatprep.mubr.f32.mxu0 0.0
    %183 = vmatmul.mubr.f32.gmra.mrb[0].mxu0 %v99
    %v184 = vpop.f32.mrb[0].mxu0
    %v185 = vadd.f32 0.0, %v184
    %v186 = vpop.f32.mrb[0].mxu0
    %187 = vmatprep.mubr.f32.mxu0 0.0
    %188 = vmatmul.mubr.f32.gmra.mrb[0].mxu0 %v102
    %v189 = vpop.f32.mrb[0].mxu0
    %v190 = vadd.f32 0.0, %v189
    %v191 = vpop.f32.mrb[0].mxu0
    %192 = vdwg.mxu0
    %v193 = vld [vmem:[%s7] sm:$0xff]
    %v194 = vld [vmem:[%s7 + $0x8] sm:$0xff]
    %v195 = vld [vmem:[%s7 + $0x10] sm:$0xff]
    %v196 = vld [vmem:[%s7 + $0x18] sm:$0xff]
    %v197 = vld [vmem:[%s8] sm:$0x1]
    %v198 = vld [vmem:[%s2] sm:$0xff]
    %v199 = vld [vmem:[%s2 + $0x8] sm:$0xff]
    %v200 = vld [vmem:[%s2 + $0x10] sm:$0xff]
    %v201 = vld [vmem:[%s2 + $0x18] sm:$0xff]
    %v202 = vld [vmem:[%s3] sm:$0xff]
    %v203 = vld [vmem:[%s3 + $0x8] sm:$0xff]
    %v204 = vld [vmem:[%s3 + $0x10] sm:$0xff]
    %v205 = vld [vmem:[%s3 + $0x18] sm:$0xff]
    %v206 = vld [vmem:[%s3 + $0x20] sm:$0xff]
    %v207 = vld [vmem:[%s3 + $0x28] sm:$0xff]
    %v208 = vld [vmem:[%s3 + $0x30] sm:$0xff]
    %v209 = vld [vmem:[%s3 + $0x38] sm:$0xff]
    %v210 = vld [vmem:[%s3 + $0x40] sm:$0xff]
    %v211 = vld [vmem:[%s3 + $0x48] sm:$0xff]
    %v212 = vld [vmem:[%s3 + $0x50] sm:$0xff]
    %v213 = vld [vmem:[%s3 + $0x58] sm:$0xff]
    %v214 = vld [vmem:[%s4] sm:$0x1]
    %v216 = vrot.slane %v190, 7
    %vm221 = vcmask 1040384
    %v222 = vrot.slane %v175, 7
    %v223 = vrot.slane %v180, 7
    %v224 = vsel %vm221, %v222, %v223
    %v225 = vrot.slane %v185, 7
    %v226 = vsel %vm221, %v223, %v225
    %v227 = vsel %vm221, %v225, %v216
    %v232 = vsel %vm221, %v216, %v222
    %vm233 = vcmp.ge.s32.totalorder %v46, 1
    %v234 = vsel %vm233, %v232, 0.0
    %v235 = vsel %vm233, %v224, 0.0
    %v236 = vsel %vm233, %v226, 0.0
    %v237 = vsel %vm233, %v227, 0.0
    %vm238 = vcmask 1046528
    %v239 = vrot.slane %v175, 1
    %v240 = vrot.slane %v180, 1
    %v241 = vsel %vm238, %v239, %v240
    %v242 = vrot.slane %v185, 1
    %v243 = vsel %vm238, %v240, %v242
    %v244 = vrot.slane %v190, 1
    %v245 = vsel %vm238, %v242, %v244
    %v251 = vsel %vm238, %v244, %v239
    %vm252 = vcmp.lt.s32.totalorder %v46, 7
    %v253 = vsel %vm252, %v241, 0.0
    %v254 = vsel %vm252, %v243, 0.0
    %v255 = vsel %vm252, %v245, 0.0
    %v256 = vsel %vm252, %v251, 0.0
    %257 = vrot.lane.b32.xlu0 %v175, 32
    %v258 = vpop.permute.xlu0 %257
    %259 = vrot.lane.b32.xlu0 %v180, 32
    %v260 = vpop.permute.xlu0 %259
    %261 = vrot.lane.b32.xlu0 %v185, 32
    %v262 = vpop.permute.xlu0 %261
    %263 = vrot.lane.b32.xlu0 %v190, 32
    %v264 = vpop.permute.xlu0 %263
    %273 = vrot.lane.b32.xlu0 %v253, 64
    %v274 = vpop.permute.xlu0 %273
    %275 = vrot.lane.b32.xlu0 %v254, 64
    %v276 = vpop.permute.xlu0 %275
    %277 = vrot.lane.b32.xlu0 %v255, 64
    %v278 = vpop.permute.xlu0 %277
    %279 = vrot.lane.b32.xlu0 %v256, 64
    %v280 = vpop.permute.xlu0 %279
    %vm285 = vcmask 261120
    %v286 = vsel %vm285, %v234, %v258
    %v287 = vsel %vm285, %v235, %v260
    %v288 = vsel %vm285, %v236, %v262
    %v289 = vsel %vm285, %v237, %v264
    %vm290 = vcmask 523264
    %v291 = vsel %vm290, %v286, %v274
    %v292 = vsel %vm290, %v287, %v276
    %v293 = vsel %vm290, %v288, %v278
    %v294 = vsel %vm290, %v289, %v280
    %v296 = vlaneseq
    %v297 = vshrl.u32 %v296, 7
    %v298 = vsub.s32 0, %v297
    %v299 = vrot.slane %v214, %v298
    %vm301 = vcmask 785408
    %v303 = vsel %vm301, %v291, 0
    %v306 = vsel %vm301, %v292, 0
    %v309 = vsel %vm301, %v293, 0
    %v312 = vsel %vm301, %v294, 0
    %314 = vmatprep.subr.mxu0 0.0
    %315 = vmatpush1.msra.mxu0 %v202
    %316 = vmatprep.subr.mxu0 0.0
    %317 = vmatpush1.msra.mxu0 %v203
    %318 = vmatprep.subr.mxu0 0.0
    %319 = vmatpush1.msra.mxu0 %v204
    %320 = vmatprep.subr.mxu0 0.0
    %321 = vmatpush1.msra.mxu0 %v205
    %322 = vmatprep.subr.mxu0 0.0
    %323 = vmatpush1.msra.mxu0 %v206
    %324 = vmatprep.subr.mxu0 0.0
    %325 = vmatpush1.msra.mxu0 %v207
    %326 = vmatprep.subr.mxu0 0.0
    %327 = vmatpush1.msra.mxu0 %v208
    %328 = vmatprep.subr.mxu0 0.0
    %329 = vmatpush1.msra.mxu0 %v209
    %330 = vmatprep.subr.mxu0 0.0
    %331 = vmatpush1.msra.mxu0 %v210
    %332 = vmatprep.subr.mxu0 0.0
    %333 = vmatpush1.msra.mxu0 %v211
    %334 = vmatprep.subr.mxu0 0.0
    %335 = vmatpush1.msra.mxu0 %v212
    %336 = vmatprep.subr.mxu0 0.0
    %337 = vmatpush1.msra.mxu0 %v213
    %338 = vmatprep.subr.mxu0 0.0
    %339 = vmatpush1.msra.mxu0 0.0
    %340 = vmatprep.subr.mxu0 0.0
    %341 = vmatpush1.msra.mxu0 0.0
    %342 = vmatprep.subr.mxu0 0.0
    %343 = vmatpush1.msra.mxu0 0.0
    %344 = vmatprep.subr.mxu0 0.0
    %345 = vmatpush1.msra.mxu0 0.0
    %346 = vmatprep.subr.mxu0 0.0
    %347 = vmatpush1.msra.mxu0 0.0
    %348 = vmatprep.subr.mxu0 0.0
    %349 = vmatpush1.msra.mxu0 0.0
    %350 = vmatprep.subr.mxu0 0.0
    %351 = vmatpush1.msra.mxu0 0.0
    %352 = vmatprep.subr.mxu0 0.0
    %353 = vmatpush1.msra.mxu0 0.0
    %354 = vmatprep.subr.mxu0 0.0
    %355 = vmatpush1.msra.mxu0 0.0
    %356 = vmatprep.subr.mxu0 0.0
    %357 = vmatpush1.msra.mxu0 0.0
    %358 = vmatprep.subr.mxu0 0.0
    %359 = vmatpush1.msra.mxu0 0.0
    %360 = vmatprep.subr.mxu0 0.0
    %361 = vmatpush1.msra.mxu0 0.0
    %362 = vmatprep.subr.mxu0 0.0
    %363 = vmatpush1.msra.mxu0 0.0
    %364 = vmatprep.subr.mxu0 0.0
    %365 = vmatpush1.msra.mxu0 0.0
    %366 = vmatprep.subr.mxu0 0.0
    %367 = vmatpush1.msra.mxu0 0.0
    %368 = vmatprep.subr.mxu0 0.0
    %369 = vmatpush1.msra.mxu0 0.0
    %370 = vmatprep.subr.mxu0 0.0
    %371 = vmatpush1.msra.mxu0 0.0
    %372 = vmatprep.subr.mxu0 0.0
    %373 = vmatpush1.msra.mxu0 0.0
    %374 = vmatprep.subr.mxu0 0.0
    %375 = vmatpush1.msra.mxu0 0.0
    %376 = vmatprep.subr.mxu0 0.0
    %377 = vmatpush1.msra.mxu0 0.0
    %378 = vmatprep.mubr.f32.mxu0 0.0
    %379 = vmatmul.mubr.f32.gmra.mrb[0].mxu0 %v303
    %v380 = vpop.f32.mrb[0].mxu0
    %v381 = vadd.f32 %v299, %v380
    %v382 = vpop.f32.mrb[0].mxu0
    %383 = vmatprep.mubr.f32.mxu0 0.0
    %384 = vmatmul.mubr.f32.gmra.mrb[0].mxu0 %v306
    %v385 = vpop.f32.mrb[0].mxu0
    %v386 = vadd.f32 %v299, %v385
    %v387 = vpop.f32.mrb[0].mxu0
    %388 = vmatprep.mubr.f32.mxu0 0.0
    %389 = vmatmul.mubr.f32.gmra.mrb[0].mxu0 %v309
    %v390 = vpop.f32.mrb[0].mxu0
    %v391 = vadd.f32 %v299, %v390
    %v392 = vpop.f32.mrb[0].mxu0
    %393 = vmatprep.mubr.f32.mxu0 0.0
    %394 = vmatmul.mubr.f32.gmra.mrb[0].mxu0 %v312
    %v395 = vpop.f32.mrb[0].mxu0
    %v396 = vadd.f32 %v299, %v395
    %v397 = vpop.f32.mrb[0].mxu0
    %398 = vdwg.mxu0
    %403 = vrot.lane.b32.xlu0 %v381, 64
    %v404 = vpop.permute.xlu0 %403
    %405 = vrot.lane.b32.xlu0 %v386, 64
    %v406 = vpop.permute.xlu0 %405
    %407 = vrot.lane.b32.xlu0 %v391, 64
    %v408 = vpop.permute.xlu0 %407
    %409 = vrot.lane.b32.xlu0 %v396, 64
    %v410 = vpop.permute.xlu0 %409
    %v415 = vsel %vm50, %v381, %v404
    %v416 = vsel %vm51, %v386, %v406
    %v417 = vsel %vm52, %v391, %v408
    %v418 = vsel %vm53, %v396, %v410
    %v419 = vxor.u32 %v415, 2147483648
    %v420 = vxor.u32 %v416, 2147483648
    %v421 = vxor.u32 %v417, 2147483648
    %v422 = vxor.u32 %v418, 2147483648
    %v423 = vmul.f32 %v419, 1.442695
    %v424 = vpow.pop %v423
    %v425 = vmul.f32 %v420, 1.442695
    %v426 = vpow.pop %v425
    %v427 = vmul.f32 %v421, 1.442695
    %v428 = vpow.pop %v427
    %v429 = vmul.f32 %v422, 1.442695
    %v430 = vpow.pop %v429
    %v431 = vadd.f32 %v424, 1.0
    %v432 = vadd.f32 %v426, 1.0
    %v433 = vadd.f32 %v428, 1.0
    %v434 = vadd.f32 %v430, 1.0
    %v435 = vrcp.pop %v431
    %v436 = vmul.f32 1.0, %v435
    %v437 = vrcp.pop %v432
    %v438 = vmul.f32 1.0, %v437
    %v439 = vrcp.pop %v433
    %v440 = vmul.f32 1.0, %v439
    %v441 = vrcp.pop %v434
    %v442 = vmul.f32 1.0, %v441
    %447 = vrot.lane.b32.xlu0 %v436, 96
    %v448 = vpop.permute.xlu0 %447
    %449 = vrot.lane.b32.xlu0 %v438, 96
    %v450 = vpop.permute.xlu0 %449
    %451 = vrot.lane.b32.xlu0 %v440, 96
    %v452 = vpop.permute.xlu0 %451
    %453 = vrot.lane.b32.xlu0 %v442, 96
    %v454 = vpop.permute.xlu0 %453
    %v459 = vmul.f32 %v415, %v448
    %v460 = vmul.f32 %v416, %v450
    %v461 = vmul.f32 %v417, %v452
    %v462 = vmul.f32 %v418, %v454
    %v463 = vadd.f32 %v459, %v175
    %v464 = vadd.f32 %v460, %v180
    %v465 = vadd.f32 %v461, %v185
    %v466 = vadd.f32 %v462, %v190
    %v468 = vlaneseq
    %v469 = vshrl.u32 %v468, 7
    %v470 = vsub.s32 0, %v469
    %v471 = vrot.slane %v197, %v470
    %v474 = vsel %vm285, %v463, 0
    %v477 = vsel %vm285, %v464, 0
    %v480 = vsel %vm285, %v465, 0
    %v483 = vsel %vm285, %v466, 0
    %485 = vmatprep.subr.mxu0 0.0
    %486 = vmatpush1.msra.mxu0 %v193
    %487 = vmatprep.subr.mxu0 0.0
    %488 = vmatpush1.msra.mxu0 %v194
    %489 = vmatprep.subr.mxu0 0.0
    %490 = vmatpush1.msra.mxu0 %v195
    %491 = vmatprep.subr.mxu0 0.0
    %492 = vmatpush1.msra.mxu0 %v196
    %493 = vmatprep.subr.mxu0 0.0
    %494 = vmatpush1.msra.mxu0 0.0
    %495 = vmatprep.subr.mxu0 0.0
    %496 = vmatpush1.msra.mxu0 0.0
    %497 = vmatprep.subr.mxu0 0.0
    %498 = vmatpush1.msra.mxu0 0.0
    %499 = vmatprep.subr.mxu0 0.0
    %500 = vmatpush1.msra.mxu0 0.0
    %501 = vmatprep.subr.mxu0 0.0
    %502 = vmatpush1.msra.mxu0 0.0
    %503 = vmatprep.subr.mxu0 0.0
    %504 = vmatpush1.msra.mxu0 0.0
    %505 = vmatprep.subr.mxu0 0.0
    %506 = vmatpush1.msra.mxu0 0.0
    %507 = vmatprep.subr.mxu0 0.0
    %508 = vmatpush1.msra.mxu0 0.0
    %509 = vmatprep.subr.mxu0 0.0
    %510 = vmatpush1.msra.mxu0 0.0
    %511 = vmatprep.subr.mxu0 0.0
    %512 = vmatpush1.msra.mxu0 0.0
    %513 = vmatprep.subr.mxu0 0.0
    %514 = vmatpush1.msra.mxu0 0.0
    %515 = vmatprep.subr.mxu0 0.0
    %516 = vmatpush1.msra.mxu0 0.0
    %517 = vmatprep.subr.mxu0 0.0
    %518 = vmatpush1.msra.mxu0 0.0
    %519 = vmatprep.subr.mxu0 0.0
    %520 = vmatpush1.msra.mxu0 0.0
    %521 = vmatprep.subr.mxu0 0.0
    %522 = vmatpush1.msra.mxu0 0.0
    %523 = vmatprep.subr.mxu0 0.0
    %524 = vmatpush1.msra.mxu0 0.0
    %525 = vmatprep.subr.mxu0 0.0
    %526 = vmatpush1.msra.mxu0 0.0
    %527 = vmatprep.subr.mxu0 0.0
    %528 = vmatpush1.msra.mxu0 0.0
    %529 = vmatprep.subr.mxu0 0.0
    %530 = vmatpush1.msra.mxu0 0.0
    %531 = vmatprep.subr.mxu0 0.0
    %532 = vmatpush1.msra.mxu0 0.0
    %533 = vmatprep.subr.mxu0 0.0
    %534 = vmatpush1.msra.mxu0 0.0
    %535 = vmatprep.subr.mxu0 0.0
    %536 = vmatpush1.msra.mxu0 0.0
    %537 = vmatprep.subr.mxu0 0.0
    %538 = vmatpush1.msra.mxu0 0.0
    %539 = vmatprep.subr.mxu0 0.0
    %540 = vmatpush1.msra.mxu0 0.0
    %541 = vmatprep.subr.mxu0 0.0
    %542 = vmatpush1.msra.mxu0 0.0
    %543 = vmatprep.subr.mxu0 0.0
    %544 = vmatpush1.msra.mxu0 0.0
    %545 = vmatprep.subr.mxu0 0.0
    %546 = vmatpush1.msra.mxu0 0.0
    %547 = vmatprep.subr.mxu0 0.0
    %548 = vmatpush1.msra.mxu0 0.0
    %549 = vmatprep.mubr.f32.mxu0 0.0
    %550 = vmatmul.mubr.f32.gmra.mrb[0].mxu0 %v474
    %v551 = vpop.f32.mrb[0].mxu0
    %v552 = vadd.f32 %v471, %v551
    %v553 = vpop.f32.mrb[0].mxu0
    %554 = vmatprep.mubr.f32.mxu0 0.0
    %555 = vmatmul.mubr.f32.gmra.mrb[0].mxu0 %v477
    %v556 = vpop.f32.mrb[0].mxu0
    %v557 = vadd.f32 %v471, %v556
    %v558 = vpop.f32.mrb[0].mxu0
    %559 = vmatprep.mubr.f32.mxu0 0.0
    %560 = vmatmul.mubr.f32.gmra.mrb[0].mxu0 %v480
    %v561 = vpop.f32.mrb[0].mxu0
    %v562 = vadd.f32 %v471, %v561
    %v563 = vpop.f32.mrb[0].mxu0
    %564 = vmatprep.mubr.f32.mxu0 0.0
    %565 = vmatmul.mubr.f32.gmra.mrb[0].mxu0 %v483
    %v566 = vpop.f32.mrb[0].mxu0
    %v567 = vadd.f32 %v471, %v566
    %v568 = vpop.f32.mrb[0].mxu0
    %569 = vdwg.mxu0
    %v570 = vsel %vm50, %v552, %v463
    %v571 = vsel %vm51, %v557, %v464
    %v572 = vsel %vm52, %v562, %v465
    %v573 = vsel %vm53, %v567, %v466
    %v575 = vsel %vm285, %v570, 0
    %v578 = vsel %vm285, %v571, 0
    %v581 = vsel %vm285, %v572, 0
    %v584 = vsel %vm285, %v573, 0
    %586 = vmatprep.subr.mxu0 0.0
    %587 = vmatpush1.xpose.msra.mxu0 %v581
    %588 = vmatprep.subr.mxu0 0.0
    %589 = vmatpush1.xpose.msra.mxu0 %v584
    %590 = vmatprep.subr.mxu0 0.0
    %591 = vmatpush1.xpose.msra.mxu0 %v575
    %592 = vmatprep.subr.mxu0 0.0
    %593 = vmatpush1.xpose.msra.mxu0 %v578
    %594 = vmatprep.subr.mxu0 0.0
    %595 = vmatpush1.xpose.msra.mxu0 0.0
    %596 = vmatprep.subr.mxu0 0.0
    %597 = vmatpush1.xpose.msra.mxu0 0.0
    %598 = vmatprep.subr.mxu0 0.0
    %599 = vmatpush1.xpose.msra.mxu0 0.0
    %600 = vmatprep.subr.mxu0 0.0
    %601 = vmatpush1.xpose.msra.mxu0 0.0
    %602 = vmatprep.subr.mxu0 0.0
    %603 = vmatpush1.xpose.msra.mxu0 0.0
    %604 = vmatprep.subr.mxu0 0.0
    %605 = vmatpush1.xpose.msra.mxu0 0.0
    %606 = vmatprep.subr.mxu0 0.0
    %607 = vmatpush1.xpose.msra.mxu0 0.0
    %608 = vmatprep.subr.mxu0 0.0
    %609 = vmatpush1.xpose.msra.mxu0 0.0
    %610 = vmatprep.subr.mxu0 0.0
    %611 = vmatpush1.xpose.msra.mxu0 0.0
    %612 = vmatprep.subr.mxu0 0.0
    %613 = vmatpush1.xpose.msra.mxu0 0.0
    %614 = vmatprep.subr.mxu0 0.0
    %615 = vmatpush1.xpose.msra.mxu0 0.0
    %616 = vmatprep.subr.mxu0 0.0
    %617 = vmatpush1.xpose.msra.mxu0 0.0
    %618 = vmatprep.subr.mxu0 0.0
    %619 = vmatpush1.xpose.msra.mxu0 0.0
    %620 = vmatprep.subr.mxu0 0.0
    %621 = vmatpush1.xpose.msra.mxu0 0.0
    %622 = vmatprep.subr.mxu0 0.0
    %623 = vmatpush1.xpose.msra.mxu0 0.0
    %624 = vmatprep.subr.mxu0 0.0
    %625 = vmatpush1.xpose.msra.mxu0 0.0
    %626 = vmatprep.subr.mxu0 0.0
    %627 = vmatpush1.xpose.msra.mxu0 0.0
    %628 = vmatprep.subr.mxu0 0.0
    %629 = vmatpush1.xpose.msra.mxu0 0.0
    %630 = vmatprep.subr.mxu0 0.0
    %631 = vmatpush1.xpose.msra.mxu0 0.0
    %632 = vmatprep.subr.mxu0 0.0
    %633 = vmatpush1.xpose.msra.mxu0 0.0
    %634 = vmatprep.subr.mxu0 0.0
    %635 = vmatpush1.xpose.msra.mxu0 0.0
    %636 = vmatprep.subr.mxu0 0.0
    %637 = vmatpush1.xpose.msra.mxu0 0.0
    %638 = vmatprep.subr.mxu0 0.0
    %639 = vmatpush1.xpose.msra.mxu0 0.0
    %640 = vmatprep.subr.mxu0 0.0
    %641 = vmatpush1.xpose.msra.mxu0 0.0
    %642 = vmatprep.subr.mxu0 0.0
    %643 = vmatpush1.xpose.msra.mxu0 0.0
    %644 = vmatprep.subr.mxu0 0.0
    %645 = vmatpush1.xpose.msra.mxu0 0.0
    %646 = vmatprep.subr.mxu0 0.0
    %647 = vmatpush1.xpose.msra.mxu0 0.0
    %648 = vmatprep.subr.mxu0 0.0
    %649 = vmatpush1.xpose.msra.mxu0 0.0
    %650 = vmatprep.mubr.f32.mxu0 0.0
    %651 = vmatmul.mubr.f32.gmra.mrb[0].mxu0 %v575
    %v652 = vpop.f32.mrb[0].mxu0
    %v653 = vadd.f32 0.0, %v652
    %v654 = vpop.f32.mrb[0].mxu0
    %655 = vmatprep.mubr.f32.mxu0 0.0
    %656 = vmatmul.mubr.f32.gmra.mrb[0].mxu0 %v578
    %v657 = vpop.f32.mrb[0].mxu0
    %v658 = vadd.f32 0.0, %v657
    %v659 = vpop.f32.mrb[0].mxu0
    %660 = vmatprep.mubr.f32.mxu0 0.0
    %661 = vmatmul.mubr.f32.gmra.mrb[0].mxu0 %v581
    %v662 = vpop.f32.mrb[0].mxu0
    %v663 = vadd.f32 0.0, %v662
    %v664 = vpop.f32.mrb[0].mxu0
    %665 = vmatprep.mubr.f32.mxu0 0.0
    %666 = vmatmul.mubr.f32.gmra.mrb[0].mxu0 %v584
    %v667 = vpop.f32.mrb[0].mxu0
    %v668 = vadd.f32 0.0, %v667
    %v669 = vpop.f32.mrb[0].mxu0
    %670 = vdwg.mxu0
    %v671 = vmul.f32 %v653, 0.17677669
    %v672 = vmul.f32 %v658, 0.17677669
    %v673 = vmul.f32 %v663, 0.17677669
    %v674 = vmul.f32 %v668, 0.17677669
    %v675 = vadd.f32 %v671, %v198
    %v676 = vadd.f32 %v672, %v199
    %v677 = vadd.f32 %v673, %v200
    %v678 = vadd.f32 %v674, %v201
    %v679 = vsel %vm285, %v675, -inf
    %680 = vmax.xlane.f32.xlu0 %v679
    %v681 = vpop.xlane.xlu0 %680
    %v682 = vsel %vm285, %v676, -inf
    %683 = vmax.xlane.f32.xlu0 %v682
    %v684 = vpop.xlane.xlu0 %683
    %v685 = vsel %vm285, %v677, -inf
    %686 = vmax.xlane.f32.xlu0 %v685
    %v687 = vpop.xlane.xlu0 %686
    %v688 = vsel %vm285, %v678, -inf
    %689 = vmax.xlane.f32.xlu0 %v688
    %v690 = vpop.xlane.xlu0 %689
    %v691 = vsub.f32 %v675, %v681
    %v692 = vsub.f32 %v676, %v684
    %v693 = vsub.f32 %v677, %v687
    %v694 = vsub.f32 %v678, %v690
    %v695 = vmul.f32 %v691, 1.442695
    %v696 = vpow.pop %v695
    %v697 = vmul.f32 %v692, 1.442695
    %v698 = vpow.pop %v697
    %v699 = vmul.f32 %v693, 1.442695
    %v700 = vpow.pop %v699
    %v701 = vmul.f32 %v694, 1.442695
    %v702 = vpow.pop %v701
    %v703 = vsel %vm285, %v696, 0.0
    %704 = vadd.xlane.f32.xlu0 %v703
    %v705 = vpop.xlane.xlu0 %704
    %v706 = vsel %vm285, %v698, 0.0
    %707 = vadd.xlane.f32.xlu0 %v706
    %v708 = vpop.xlane.xlu0 %707
    %v709 = vsel %vm285, %v700, 0.0
    %710 = vadd.xlane.f32.xlu0 %v709
    %v711 = vpop.xlane.xlu0 %710
    %v712 = vsel %vm285, %v702, 0.0
    %713 = vadd.xlane.f32.xlu0 %v712
    %v714 = vpop.xlane.xlu0 %713
    %v715 = vrcp.pop %v705
    %v716 = vmul.f32 %v696, %v715
    %v717 = vrcp.pop %v708
    %v718 = vmul.f32 %v698, %v717
    %v719 = vrcp.pop %v711
    %v720 = vmul.f32 %v700, %v719
    %v721 = vrcp.pop %v714
    %v722 = vmul.f32 %v702, %v721
    %v724 = vsel %vm285, %v716, 0
    %v727 = vsel %vm285, %v718, 0
    %v730 = vsel %vm285, %v720, 0
    %v733 = vsel %vm285, %v722, 0
    %735 = vmatprep.subr.mxu0 0.0
    %736 = vmatpush1.msra.mxu0 %v465
    %737 = vmatprep.subr.mxu0 0.0
    %738 = vmatpush1.msra.mxu0 %v466
    %739 = vmatprep.subr.mxu0 0.0
    %740 = vmatpush1.msra.mxu0 %v463
    %741 = vmatprep.subr.mxu0 0.0
    %742 = vmatpush1.msra.mxu0 %v464
    %743 = vmatprep.subr.mxu0 0.0
    %744 = vmatpush1.msra.mxu0 0.0
    %745 = vmatprep.subr.mxu0 0.0
    %746 = vmatpush1.msra.mxu0 0.0
    %747 = vmatprep.subr.mxu0 0.0
    %748 = vmatpush1.msra.mxu0 0.0
    %749 = vmatprep.subr.mxu0 0.0
    %750 = vmatpush1.msra.mxu0 0.0
    %751 = vmatprep.subr.mxu0 0.0
    %752 = vmatpush1.msra.mxu0 0.0
    %753 = vmatprep.subr.mxu0 0.0
    %754 = vmatpush1.msra.mxu0 0.0
    %755 = vmatprep.subr.mxu0 0.0
    %756 = vmatpush1.msra.mxu0 0.0
    %757 = vmatprep.subr.mxu0 0.0
    %758 = vmatpush1.msra.mxu0 0.0
    %759 = vmatprep.subr.mxu0 0.0
    %760 = vmatpush1.msra.mxu0 0.0
    %761 = vmatprep.subr.mxu0 0.0
    %762 = vmatpush1.msra.mxu0 0.0
    %763 = vmatprep.subr.mxu0 0.0
    %764 = vmatpush1.msra.mxu0 0.0
    %765 = vmatprep.subr.mxu0 0.0
    %766 = vmatpush1.msra.mxu0 0.0
    %767 = vmatprep.subr.mxu0 0.0
    %768 = vmatpush1.msra.mxu0 0.0
    %769 = vmatprep.subr.mxu0 0.0
    %770 = vmatpush1.msra.mxu0 0.0
    %771 = vmatprep.subr.mxu0 0.0
    %772 = vmatpush1.msra.mxu0 0.0
    %773 = vmatprep.subr.mxu0 0.0
    %774 = vmatpush1.msra.mxu0 0.0
    %775 = vmatprep.subr.mxu0 0.0
    %776 = vmatpush1.msra.mxu0 0.0
    %777 = vmatprep.subr.mxu0 0.0
    %778 = vmatpush1.msra.mxu0 0.0
    %779 = vmatprep.subr.mxu0 0.0
    %780 = vmatpush1.msra.mxu0 0.0
    %781 = vmatprep.subr.mxu0 0.0
    %782 = vmatpush1.msra.mxu0 0.0
    %783 = vmatprep.subr.mxu0 0.0
    %784 = vmatpush1.msra.mxu0 0.0
    %785 = vmatprep.subr.mxu0 0.0
    %786 = vmatpush1.msra.mxu0 0.0
    %787 = vmatprep.subr.mxu0 0.0
    %788 = vmatpush1.msra.mxu0 0.0
    %789 = vmatprep.subr.mxu0 0.0
    %790 = vmatpush1.msra.mxu0 0.0
    %791 = vmatprep.subr.mxu0 0.0
    %792 = vmatpush1.msra.mxu0 0.0
    %793 = vmatprep.subr.mxu0 0.0
    %794 = vmatpush1.msra.mxu0 0.0
    %795 = vmatprep.subr.mxu0 0.0
    %796 = vmatpush1.msra.mxu0 0.0
    %797 = vmatprep.subr.mxu0 0.0
    %798 = vmatpush1.msra.mxu0 0.0
    %799 = vmatprep.mubr.f32.mxu0 0.0
    %800 = vmatmul.mubr.f32.gmra.mrb[0].mxu0 %v724
    %v801 = vpop.f32.mrb[0].mxu0
    %v802 = vadd.f32 0.0, %v801
    %v803 = vpop.f32.mrb[0].mxu0
    %804 = vmatprep.mubr.f32.mxu0 0.0
    %805 = vmatmul.mubr.f32.gmra.mrb[0].mxu0 %v727
    %v806 = vpop.f32.mrb[0].mxu0
    %v807 = vadd.f32 0.0, %v806
    %v808 = vpop.f32.mrb[0].mxu0
    %809 = vmatprep.mubr.f32.mxu0 0.0
    %810 = vmatmul.mubr.f32.gmra.mrb[0].mxu0 %v730
    %v811 = vpop.f32.mrb[0].mxu0
    %v812 = vadd.f32 0.0, %v811
    %v813 = vpop.f32.mrb[0].mxu0
    %814 = vmatprep.mubr.f32.mxu0 0.0
    %815 = vmatmul.mubr.f32.gmra.mrb[0].mxu0 %v733
    %v816 = vpop.f32.mrb[0].mxu0
    %v817 = vadd.f32 0.0, %v816
    %v818 = vpop.f32.mrb[0].mxu0
    %819 = vdwg.mxu0
    %v820 = vsel %vm285, %v802, -inf
    %v821 = vrot.slane %v820, 4
    %v822 = vmax.f32 %v820, %v821
    %v823 = vrot.slane %v822, 2
    %v824 = vmax.f32 %v822, %v823
    %v825 = vrot.slane %v824, 1
    %v826 = vmax.f32 %v824, %v825
    %v827 = vsel %vm285, %v807, -inf
    %v828 = vrot.slane %v827, 4
    %v829 = vmax.f32 %v827, %v828
    %v830 = vrot.slane %v829, 2
    %v831 = vmax.f32 %v829, %v830
    %v832 = vrot.slane %v831, 1
    %v833 = vmax.f32 %v831, %v832
    %v834 = vsel %vm285, %v812, -inf
    %v835 = vrot.slane %v834, 4
    %v836 = vmax.f32 %v834, %v835
    %v837 = vrot.slane %v836, 2
    %v838 = vmax.f32 %v836, %v837
    %v839 = vrot.slane %v838, 1
    %v840 = vmax.f32 %v838, %v839
    %v841 = vsel %vm285, %v817, -inf
    %v842 = vrot.slane %v841, 4
    %v843 = vmax.f32 %v841, %v842
    %v844 = vrot.slane %v843, 2
    %v845 = vmax.f32 %v843, %v844
    %v846 = vrot.slane %v845, 1
    %v847 = vmax.f32 %v845, %v846
    %vm848 = vcmp.eq.f32.partialorder %v802, %v826
    %vm849 = vcmp.eq.f32.partialorder %v807, %v833
    %vm850 = vcmp.eq.f32.partialorder %v812, %v840
    %vm851 = vcmp.eq.f32.partialorder %v817, %v847
    %v852 = vsel %vm848, %v46, 8
    %v853 = vsel %vm849, %v46, 8
    %v854 = vsel %vm850, %v46, 8
    %v855 = vsel %vm851, %v46, 8
    %v856 = vsel %vm285, %v852, 2147483647
    %v857 = vrot.slane %v856, 4
    %vm858 = vcmp.lt.s32.totalorder %v856, %v857
    %v859 = vsel %vm858, %v856, %v857
    %v860 = vrot.slane %v859, 2
    %vm861 = vcmp.lt.s32.totalorder %v859, %v860
    %v862 = vsel %vm861, %v859, %v860
    %v863 = vrot.slane %v862, 1
    %vm864 = vcmp.lt.s32.totalorder %v862, %v863
    %v865 = vsel %vm864, %v862, %v863
    %v866 = vsel %vm285, %v853, 2147483647
    %v867 = vrot.slane %v866, 4
    %vm868 = vcmp.lt.s32.totalorder %v866, %v867
    %v869 = vsel %vm868, %v866, %v867
    %v870 = vrot.slane %v869, 2
    %vm871 = vcmp.lt.s32.totalorder %v869, %v870
    %v872 = vsel %vm871, %v869, %v870
    %v873 = vrot.slane %v872, 1
    %vm874 = vcmp.lt.s32.totalorder %v872, %v873
    %v875 = vsel %vm874, %v872, %v873
    %v876 = vsel %vm285, %v854, 2147483647
    %v877 = vrot.slane %v876, 4
    %vm878 = vcmp.lt.s32.totalorder %v876, %v877
    %v879 = vsel %vm878, %v876, %v877
    %v880 = vrot.slane %v879, 2
    %vm881 = vcmp.lt.s32.totalorder %v879, %v880
    %v882 = vsel %vm881, %v879, %v880
    %v883 = vrot.slane %v882, 1
    %vm884 = vcmp.lt.s32.totalorder %v882, %v883
    %v885 = vsel %vm884, %v882, %v883
    %v886 = vsel %vm285, %v855, 2147483647
    %v887 = vrot.slane %v886, 4
    %vm888 = vcmp.lt.s32.totalorder %v886, %v887
    %v889 = vsel %vm888, %v886, %v887
    %v890 = vrot.slane %v889, 2
    %vm891 = vcmp.lt.s32.totalorder %v889, %v890
    %v892 = vsel %vm891, %v889, %v890
    %v893 = vrot.slane %v892, 1
    %vm894 = vcmp.lt.s32.totalorder %v892, %v893
    %v895 = vsel %vm894, %v892, %v893
    %vm896 = vcmp.eq.s32.totalorder %v46, %v865
    %vm897 = vcmp.eq.s32.totalorder %v46, %v875
    %vm898 = vcmp.eq.s32.totalorder %v46, %v885
    %vm899 = vcmp.eq.s32.totalorder %v46, %v895
    %v900 = vsel %vm896, -inf, %v802
    %v901 = vsel %vm897, -inf, %v807
    %v902 = vsel %vm898, -inf, %v812
    %v903 = vsel %vm899, -inf, %v817
    %v904 = vsel %vm285, %v900, -inf
    %v905 = vrot.slane %v904, 4
    %v906 = vmax.f32 %v904, %v905
    %v907 = vrot.slane %v906, 2
    %v908 = vmax.f32 %v906, %v907
    %v909 = vrot.slane %v908, 1
    %v910 = vmax.f32 %v908, %v909
    %v911 = vsel %vm285, %v901, -inf
    %v912 = vrot.slane %v911, 4
    %v913 = vmax.f32 %v911, %v912
    %v914 = vrot.slane %v913, 2
    %v915 = vmax.f32 %v913, %v914
    %v916 = vrot.slane %v915, 1
    %v917 = vmax.f32 %v915, %v916
    %v918 = vsel %vm285, %v902, -inf
    %v919 = vrot.slane %v918, 4
    %v920 = vmax.f32 %v918, %v919
    %v921 = vrot.slane %v920, 2
    %v922 = vmax.f32 %v920, %v921
    %v923 = vrot.slane %v922, 1
    %v924 = vmax.f32 %v922, %v923
    %v925 = vsel %vm285, %v903, -inf
    %v926 = vrot.slane %v925, 4
    %v927 = vmax.f32 %v925, %v926
    %v928 = vrot.slane %v927, 2
    %v929 = vmax.f32 %v927, %v928
    %v930 = vrot.slane %v929, 1
    %v931 = vmax.f32 %v929, %v930
    %vm936 = vcmask 1041409
    %v937 = vsel %vm936, %v833, %v826
    %vm938 = vcmask 1042434
    %v939 = vsel %vm938, %v840, %v937
    %vm940 = vcmask 1043459
    %v941 = vsel %vm940, %v847, %v939
    %v947 = vsel %vm936, %v917, %v910
    %v948 = vsel %vm938, %v924, %v947
    %v949 = vsel %vm940, %v931, %v948
    %950 = vrot.lane.b32.xlu0 %v949, 32
    %v951 = vpop.permute.xlu0 %950
    %v953 = vsel %vm285, %v941, %v951
    %v955 = vrot.slane %v953, 6
    %956 = vrot.lane.b32.xlu0 %v955, 64
    %v957 = vpop.permute.xlu0 %956
    %v959 = vsel %vm290, %v953, %v957
    %v960 = vld [vmem:[%s5] sm:$0xff]
    %v961 = vld [vmem:[%s5 + $0x8] sm:$0xff]
    %v962 = vld [vmem:[%s5 + $0x10] sm:$0xff]
    %v963 = vld [vmem:[%s5 + $0x18] sm:$0xff]
    %v964 = vld [vmem:[%s5 + $0x20] sm:$0xff]
    %v965 = vld [vmem:[%s5 + $0x28] sm:$0xff]
    %v966 = vld [vmem:[%s5 + $0x30] sm:$0xff]
    %v967 = vld [vmem:[%s5 + $0x38] sm:$0xff]
    %v968 = vld [vmem:[%s5 + $0x40] sm:$0xff]
    %v969 = vld [vmem:[%s5 + $0x48] sm:$0xff]
    %v970 = vld [vmem:[%s5 + $0x50] sm:$0xff]
    %v971 = vld [vmem:[%s5 + $0x58] sm:$0xff]
    %v972 = vld [vmem:[%s6] sm:$0x1]
    %v973 = vrot.slane %v466, 7
    %v975 = vrot.slane %v463, 7
    %v976 = vrot.slane %v464, 7
    %v977 = vsel %vm221, %v975, %v976
    %v978 = vrot.slane %v465, 7
    %v979 = vsel %vm221, %v976, %v978
    %v980 = vsel %vm221, %v978, %v973
    %v985 = vsel %vm221, %v973, %v975
    %v986 = vsel %vm233, %v985, 0.0
    %v987 = vsel %vm233, %v977, 0.0
    %v988 = vsel %vm233, %v979, 0.0
    %v989 = vsel %vm233, %v980, 0.0
    %v990 = vrot.slane %v463, 1
    %v991 = vrot.slane %v464, 1
    %v992 = vsel %vm238, %v990, %v991
    %v993 = vrot.slane %v465, 1
    %v994 = vsel %vm238, %v991, %v993
    %v995 = vrot.slane %v466, 1
    %v996 = vsel %vm238, %v993, %v995
    %v1002 = vsel %vm238, %v995, %v990
    %v1003 = vsel %vm252, %v992, 0.0
    %v1004 = vsel %vm252, %v994, 0.0
    %v1005 = vsel %vm252, %v996, 0.0
    %v1006 = vsel %vm252, %v1002, 0.0
    %1007 = vrot.lane.b32.xlu0 %v463, 32
    %v1008 = vpop.permute.xlu0 %1007
    %1009 = vrot.lane.b32.xlu0 %v464, 32
    %v1010 = vpop.permute.xlu0 %1009
    %1011 = vrot.lane.b32.xlu0 %v465, 32
    %v1012 = vpop.permute.xlu0 %1011
    %1013 = vrot.lane.b32.xlu0 %v466, 32
    %v1014 = vpop.permute.xlu0 %1013
    %1023 = vrot.lane.b32.xlu0 %v1003, 64
    %v1024 = vpop.permute.xlu0 %1023
    %1025 = vrot.lane.b32.xlu0 %v1004, 64
    %v1026 = vpop.permute.xlu0 %1025
    %1027 = vrot.lane.b32.xlu0 %v1005, 64
    %v1028 = vpop.permute.xlu0 %1027
    %1029 = vrot.lane.b32.xlu0 %v1006, 64
    %v1030 = vpop.permute.xlu0 %1029
    %v1035 = vsel %vm285, %v986, %v1008
    %v1036 = vsel %vm285, %v987, %v1010
    %v1037 = vsel %vm285, %v988, %v1012
    %v1038 = vsel %vm285, %v989, %v1014
    %v1039 = vsel %vm290, %v1035, %v1024
    %v1040 = vsel %vm290, %v1036, %v1026
    %v1041 = vsel %vm290, %v1037, %v1028
    %v1042 = vsel %vm290, %v1038, %v1030
    %v1044 = vlaneseq
    %v1045 = vshrl.u32 %v1044, 7
    %v1046 = vsub.s32 0, %v1045
    %v1047 = vrot.slane %v972, %v1046
    %v1050 = vsel %vm301, %v1039, 0
    %v1053 = vsel %vm301, %v1040, 0
    %v1056 = vsel %vm301, %v1041, 0
    %v1059 = vsel %vm301, %v1042, 0
    %1061 = vmatprep.subr.mxu0 0.0
    %1062 = vmatpush1.msra.mxu0 %v960
    %1063 = vmatprep.subr.mxu0 0.0
    %1064 = vmatpush1.msra.mxu0 %v961
    %1065 = vmatprep.subr.mxu0 0.0
    %1066 = vmatpush1.msra.mxu0 %v962
    %1067 = vmatprep.subr.mxu0 0.0
    %1068 = vmatpush1.msra.mxu0 %v963
    %1069 = vmatprep.subr.mxu0 0.0
    %1070 = vmatpush1.msra.mxu0 %v964
    %1071 = vmatprep.subr.mxu0 0.0
    %1072 = vmatpush1.msra.mxu0 %v965
    %1073 = vmatprep.subr.mxu0 0.0
    %1074 = vmatpush1.msra.mxu0 %v966
    %1075 = vmatprep.subr.mxu0 0.0
    %1076 = vmatpush1.msra.mxu0 %v967
    %1077 = vmatprep.subr.mxu0 0.0
    %1078 = vmatpush1.msra.mxu0 %v968
    %1079 = vmatprep.subr.mxu0 0.0
    %1080 = vmatpush1.msra.mxu0 %v969
    %1081 = vmatprep.subr.mxu0 0.0
    %1082 = vmatpush1.msra.mxu0 %v970
    %1083 = vmatprep.subr.mxu0 0.0
    %1084 = vmatpush1.msra.mxu0 %v971
    %1085 = vmatprep.subr.mxu0 0.0
    %1086 = vmatpush1.msra.mxu0 0.0
    %1087 = vmatprep.subr.mxu0 0.0
    %1088 = vmatpush1.msra.mxu0 0.0
    %1089 = vmatprep.subr.mxu0 0.0
    %1090 = vmatpush1.msra.mxu0 0.0
    %1091 = vmatprep.subr.mxu0 0.0
    %1092 = vmatpush1.msra.mxu0 0.0
    %1093 = vmatprep.subr.mxu0 0.0
    %1094 = vmatpush1.msra.mxu0 0.0
    %1095 = vmatprep.subr.mxu0 0.0
    %1096 = vmatpush1.msra.mxu0 0.0
    %1097 = vmatprep.subr.mxu0 0.0
    %1098 = vmatpush1.msra.mxu0 0.0
    %1099 = vmatprep.subr.mxu0 0.0
    %1100 = vmatpush1.msra.mxu0 0.0
    %1101 = vmatprep.subr.mxu0 0.0
    %1102 = vmatpush1.msra.mxu0 0.0
    %1103 = vmatprep.subr.mxu0 0.0
    %1104 = vmatpush1.msra.mxu0 0.0
    %1105 = vmatprep.subr.mxu0 0.0
    %1106 = vmatpush1.msra.mxu0 0.0
    %1107 = vmatprep.subr.mxu0 0.0
    %1108 = vmatpush1.msra.mxu0 0.0
    %1109 = vmatprep.subr.mxu0 0.0
    %1110 = vmatpush1.msra.mxu0 0.0
    %1111 = vmatprep.subr.mxu0 0.0
    %1112 = vmatpush1.msra.mxu0 0.0
    %1113 = vmatprep.subr.mxu0 0.0
    %1114 = vmatpush1.msra.mxu0 0.0
    %1115 = vmatprep.subr.mxu0 0.0
    %1116 = vmatpush1.msra.mxu0 0.0
    %1117 = vmatprep.subr.mxu0 0.0
    %1118 = vmatpush1.msra.mxu0 0.0
    %1119 = vmatprep.subr.mxu0 0.0
    %1120 = vmatpush1.msra.mxu0 0.0
    %1121 = vmatprep.subr.mxu0 0.0
    %1122 = vmatpush1.msra.mxu0 0.0
    %1123 = vmatprep.subr.mxu0 0.0
    %1124 = vmatpush1.msra.mxu0 0.0
    %1125 = vmatprep.mubr.f32.mxu0 0.0
    %1126 = vmatmul.mubr.f32.gmra.mrb[0].mxu0 %v1050
    %v1127 = vpop.f32.mrb[0].mxu0
    %v1128 = vadd.f32 %v1047, %v1127
    %v1129 = vpop.f32.mrb[0].mxu0
    %1130 = vmatprep.mubr.f32.mxu0 0.0
    %1131 = vmatmul.mubr.f32.gmra.mrb[0].mxu0 %v1053
    %v1132 = vpop.f32.mrb[0].mxu0
    %v1133 = vadd.f32 %v1047, %v1132
    %v1134 = vpop.f32.mrb[0].mxu0
    %1135 = vmatprep.mubr.f32.mxu0 0.0
    %1136 = vmatmul.mubr.f32.gmra.mrb[0].mxu0 %v1056
    %v1137 = vpop.f32.mrb[0].mxu0
    %v1138 = vadd.f32 %v1047, %v1137
    %v1139 = vpop.f32.mrb[0].mxu0
    %1140 = vmatprep.mubr.f32.mxu0 0.0
    %1141 = vmatmul.mubr.f32.gmra.mrb[0].mxu0 %v1059
    %v1142 = vpop.f32.mrb[0].mxu0
    %v1143 = vadd.f32 %v1047, %v1142
    %v1144 = vpop.f32.mrb[0].mxu0
    %1145 = vdwg.mxu0
    %1150 = vrot.lane.b32.xlu0 %v1128, 64
    %v1151 = vpop.permute.xlu0 %1150
    %1152 = vrot.lane.b32.xlu0 %v1133, 64
    %v1153 = vpop.permute.xlu0 %1152
    %1154 = vrot.lane.b32.xlu0 %v1138, 64
    %v1155 = vpop.permute.xlu0 %1154
    %1156 = vrot.lane.b32.xlu0 %v1143, 64
    %v1157 = vpop.permute.xlu0 %1156
    %v1162 = vsel %vm50, %v1128, %v1151
    %v1163 = vsel %vm51, %v1133, %v1153
    %v1164 = vsel %vm52, %v1138, %v1155
    %v1165 = vsel %vm53, %v1143, %v1157
    %v1166 = vxor.u32 %v1162, 2147483648
    %v1167 = vxor.u32 %v1163, 2147483648
    %v1168 = vxor.u32 %v1164, 2147483648
    %v1169 = vxor.u32 %v1165, 2147483648
    %v1170 = vmul.f32 %v1166, 1.442695
    %v1171 = vpow.pop %v1170
    %v1172 = vmul.f32 %v1167, 1.442695
    %v1173 = vpow.pop %v1172
    %v1174 = vmul.f32 %v1168, 1.442695
    %v1175 = vpow.pop %v1174
    %v1176 = vmul.f32 %v1169, 1.442695
    %v1177 = vpow.pop %v1176
    %v1178 = vadd.f32 %v1171, 1.0
    %v1179 = vadd.f32 %v1173, 1.0
    %v1180 = vadd.f32 %v1175, 1.0
    %v1181 = vadd.f32 %v1177, 1.0
    %v1182 = vrcp.pop %v1178
    %v1183 = vmul.f32 1.0, %v1182
    %v1184 = vrcp.pop %v1179
    %v1185 = vmul.f32 1.0, %v1184
    %v1186 = vrcp.pop %v1180
    %v1187 = vmul.f32 1.0, %v1186
    %v1188 = vrcp.pop %v1181
    %v1189 = vmul.f32 1.0, %v1188
    %1194 = vrot.lane.b32.xlu0 %v1183, 96
    %v1195 = vpop.permute.xlu0 %1194
    %1196 = vrot.lane.b32.xlu0 %v1185, 96
    %v1197 = vpop.permute.xlu0 %1196
    %1198 = vrot.lane.b32.xlu0 %v1187, 96
    %v1199 = vpop.permute.xlu0 %1198
    %1200 = vrot.lane.b32.xlu0 %v1189, 96
    %v1201 = vpop.permute.xlu0 %1200
    %v1206 = vmul.f32 %v1162, %v1195
    %v1207 = vmul.f32 %v1163, %v1197
    %v1208 = vmul.f32 %v1164, %v1199
    %v1209 = vmul.f32 %v1165, %v1201
    %v1210 = vadd.f32 %v1206, %v463
    %v1211 = vadd.f32 %v1207, %v464
    %v1212 = vadd.f32 %v1208, %v465
    %v1213 = vadd.f32 %v1209, %v466
    %v1215 = vsel %vm285, %v1210, 0
    %v1218 = vsel %vm285, %v1211, 0
    %v1221 = vsel %vm285, %v1212, 0
    %v1224 = vsel %vm285, %v1213, 0
    %1226 = vmatprep.subr.mxu0 0.0
    %1227 = vmatpush1.msra.mxu0 %v193
    %1228 = vmatprep.subr.mxu0 0.0
    %1229 = vmatpush1.msra.mxu0 %v194
    %1230 = vmatprep.subr.mxu0 0.0
    %1231 = vmatpush1.msra.mxu0 %v195
    %1232 = vmatprep.subr.mxu0 0.0
    %1233 = vmatpush1.msra.mxu0 %v196
    %1234 = vmatprep.subr.mxu0 0.0
    %1235 = vmatpush1.msra.mxu0 0.0
    %1236 = vmatprep.subr.mxu0 0.0
    %1237 = vmatpush1.msra.mxu0 0.0
    %1238 = vmatprep.subr.mxu0 0.0
    %1239 = vmatpush1.msra.mxu0 0.0
    %1240 = vmatprep.subr.mxu0 0.0
    %1241 = vmatpush1.msra.mxu0 0.0
    %1242 = vmatprep.subr.mxu0 0.0
    %1243 = vmatpush1.msra.mxu0 0.0
    %1244 = vmatprep.subr.mxu0 0.0
    %1245 = vmatpush1.msra.mxu0 0.0
    %1246 = vmatprep.subr.mxu0 0.0
    %1247 = vmatpush1.msra.mxu0 0.0
    %1248 = vmatprep.subr.mxu0 0.0
    %1249 = vmatpush1.msra.mxu0 0.0
    %1250 = vmatprep.subr.mxu0 0.0
    %1251 = vmatpush1.msra.mxu0 0.0
    %1252 = vmatprep.subr.mxu0 0.0
    %1253 = vmatpush1.msra.mxu0 0.0
    %1254 = vmatprep.subr.mxu0 0.0
    %1255 = vmatpush1.msra.mxu0 0.0
    %1256 = vmatprep.subr.mxu0 0.0
    %1257 = vmatpush1.msra.mxu0 0.0
    %1258 = vmatprep.subr.mxu0 0.0
    %1259 = vmatpush1.msra.mxu0 0.0
    %1260 = vmatprep.subr.mxu0 0.0
    %1261 = vmatpush1.msra.mxu0 0.0
    %1262 = vmatprep.subr.mxu0 0.0
    %1263 = vmatpush1.msra.mxu0 0.0
    %1264 = vmatprep.subr.mxu0 0.0
    %1265 = vmatpush1.msra.mxu0 0.0
    %1266 = vmatprep.subr.mxu0 0.0
    %1267 = vmatpush1.msra.mxu0 0.0
    %1268 = vmatprep.subr.mxu0 0.0
    %1269 = vmatpush1.msra.mxu0 0.0
    %1270 = vmatprep.subr.mxu0 0.0
    %1271 = vmatpush1.msra.mxu0 0.0
    %1272 = vmatprep.subr.mxu0 0.0
    %1273 = vmatpush1.msra.mxu0 0.0
    %1274 = vmatprep.subr.mxu0 0.0
    %1275 = vmatpush1.msra.mxu0 0.0
    %1276 = vmatprep.subr.mxu0 0.0
    %1277 = vmatpush1.msra.mxu0 0.0
    %1278 = vmatprep.subr.mxu0 0.0
    %1279 = vmatpush1.msra.mxu0 0.0
    %1280 = vmatprep.subr.mxu0 0.0
    %1281 = vmatpush1.msra.mxu0 0.0
    %1282 = vmatprep.subr.mxu0 0.0
    %1283 = vmatpush1.msra.mxu0 0.0
    %1284 = vmatprep.subr.mxu0 0.0
    %1285 = vmatpush1.msra.mxu0 0.0
    %1286 = vmatprep.subr.mxu0 0.0
    %1287 = vmatpush1.msra.mxu0 0.0
    %1288 = vmatprep.subr.mxu0 0.0
    %1289 = vmatpush1.msra.mxu0 0.0
    %1290 = vmatprep.mubr.f32.mxu0 0.0
    %1291 = vmatmul.mubr.f32.gmra.mrb[0].mxu0 %v1215
    %v1292 = vpop.f32.mrb[0].mxu0
    %v1293 = vadd.f32 %v471, %v1292
    %v1294 = vpop.f32.mrb[0].mxu0
    %1295 = vmatprep.mubr.f32.mxu0 0.0
    %1296 = vmatmul.mubr.f32.gmra.mrb[0].mxu0 %v1218
    %v1297 = vpop.f32.mrb[0].mxu0
    %v1298 = vadd.f32 %v471, %v1297
    %v1299 = vpop.f32.mrb[0].mxu0
    %1300 = vmatprep.mubr.f32.mxu0 0.0
    %1301 = vmatmul.mubr.f32.gmra.mrb[0].mxu0 %v1221
    %v1302 = vpop.f32.mrb[0].mxu0
    %v1303 = vadd.f32 %v471, %v1302
    %v1304 = vpop.f32.mrb[0].mxu0
    %1305 = vmatprep.mubr.f32.mxu0 0.0
    %1306 = vmatmul.mubr.f32.gmra.mrb[0].mxu0 %v1224
    %v1307 = vpop.f32.mrb[0].mxu0
    %v1308 = vadd.f32 %v471, %v1307
    %v1309 = vpop.f32.mrb[0].mxu0
    %1310 = vdwg.mxu0
    %v1311 = vsel %vm50, %v1293, %v1210
    %v1312 = vsel %vm51, %v1298, %v1211
    %v1313 = vsel %vm52, %v1303, %v1212
    %v1314 = vsel %vm53, %v1308, %v1213
    %v1316 = vsel %vm285, %v1311, 0
    %v1319 = vsel %vm285, %v1312, 0
    %v1322 = vsel %vm285, %v1313, 0
    %v1325 = vsel %vm285, %v1314, 0
    %1327 = vmatprep.subr.mxu0 0.0
    %1328 = vmatpush1.xpose.msra.mxu0 %v1322
    %1329 = vmatprep.subr.mxu0 0.0
    %1330 = vmatpush1.xpose.msra.mxu0 %v1325
    %1331 = vmatprep.subr.mxu0 0.0
    %1332 = vmatpush1.xpose.msra.mxu0 %v1316
    %1333 = vmatprep.subr.mxu0 0.0
    %1334 = vmatpush1.xpose.msra.mxu0 %v1319
    %1335 = vmatprep.subr.mxu0 0.0
    %1336 = vmatpush1.xpose.msra.mxu0 0.0
    %1337 = vmatprep.subr.mxu0 0.0
    %1338 = vmatpush1.xpose.msra.mxu0 0.0
    %1339 = vmatprep.subr.mxu0 0.0
    %1340 = vmatpush1.xpose.msra.mxu0 0.0
    %1341 = vmatprep.subr.mxu0 0.0
    %1342 = vmatpush1.xpose.msra.mxu0 0.0
    %1343 = vmatprep.subr.mxu0 0.0
    %1344 = vmatpush1.xpose.msra.mxu0 0.0
    %1345 = vmatprep.subr.mxu0 0.0
    %1346 = vmatpush1.xpose.msra.mxu0 0.0
    %1347 = vmatprep.subr.mxu0 0.0
    %1348 = vmatpush1.xpose.msra.mxu0 0.0
    %1349 = vmatprep.subr.mxu0 0.0
    %1350 = vmatpush1.xpose.msra.mxu0 0.0
    %1351 = vmatprep.subr.mxu0 0.0
    %1352 = vmatpush1.xpose.msra.mxu0 0.0
    %1353 = vmatprep.subr.mxu0 0.0
    %1354 = vmatpush1.xpose.msra.mxu0 0.0
    %1355 = vmatprep.subr.mxu0 0.0
    %1356 = vmatpush1.xpose.msra.mxu0 0.0
    %1357 = vmatprep.subr.mxu0 0.0
    %1358 = vmatpush1.xpose.msra.mxu0 0.0
    %1359 = vmatprep.subr.mxu0 0.0
    %1360 = vmatpush1.xpose.msra.mxu0 0.0
    %1361 = vmatprep.subr.mxu0 0.0
    %1362 = vmatpush1.xpose.msra.mxu0 0.0
    %1363 = vmatprep.subr.mxu0 0.0
    %1364 = vmatpush1.xpose.msra.mxu0 0.0
    %1365 = vmatprep.subr.mxu0 0.0
    %1366 = vmatpush1.xpose.msra.mxu0 0.0
    %1367 = vmatprep.subr.mxu0 0.0
    %1368 = vmatpush1.xpose.msra.mxu0 0.0
    %1369 = vmatprep.subr.mxu0 0.0
    %1370 = vmatpush1.xpose.msra.mxu0 0.0
    %1371 = vmatprep.subr.mxu0 0.0
    %1372 = vmatpush1.xpose.msra.mxu0 0.0
    %1373 = vmatprep.subr.mxu0 0.0
    %1374 = vmatpush1.xpose.msra.mxu0 0.0
    %1375 = vmatprep.subr.mxu0 0.0
    %1376 = vmatpush1.xpose.msra.mxu0 0.0
    %1377 = vmatprep.subr.mxu0 0.0
    %1378 = vmatpush1.xpose.msra.mxu0 0.0
    %1379 = vmatprep.subr.mxu0 0.0
    %1380 = vmatpush1.xpose.msra.mxu0 0.0
    %1381 = vmatprep.subr.mxu0 0.0
    %1382 = vmatpush1.xpose.msra.mxu0 0.0
    %1383 = vmatprep.subr.mxu0 0.0
    %1384 = vmatpush1.xpose.msra.mxu0 0.0
    %1385 = vmatprep.subr.mxu0 0.0
    %1386 = vmatpush1.xpose.msra.mxu0 0.0
    %1387 = vmatprep.subr.mxu0 0.0
    %1388 = vmatpush1.xpose.msra.mxu0 0.0
    %1389 = vmatprep.subr.mxu0 0.0
    %1390 = vmatpush1.xpose.msra.mxu0 0.0
    %1391 = vmatprep.mubr.f32.mxu0 0.0
    %1392 = vmatmul.mubr.f32.gmra.mrb[0].mxu0 %v1316
    %v1393 = vpop.f32.mrb[0].mxu0
    %v1394 = vadd.f32 0.0, %v1393
    %v1395 = vpop.f32.mrb[0].mxu0
    %1396 = vmatprep.mubr.f32.mxu0 0.0
    %1397 = vmatmul.mubr.f32.gmra.mrb[0].mxu0 %v1319
    %v1398 = vpop.f32.mrb[0].mxu0
    %v1399 = vadd.f32 0.0, %v1398
    %v1400 = vpop.f32.mrb[0].mxu0
    %1401 = vmatprep.mubr.f32.mxu0 0.0
    %1402 = vmatmul.mubr.f32.gmra.mrb[0].mxu0 %v1322
    %v1403 = vpop.f32.mrb[0].mxu0
    %v1404 = vadd.f32 0.0, %v1403
    %v1405 = vpop.f32.mrb[0].mxu0
    %1406 = vmatprep.mubr.f32.mxu0 0.0
    %1407 = vmatmul.mubr.f32.gmra.mrb[0].mxu0 %v1325
    %v1408 = vpop.f32.mrb[0].mxu0
    %v1409 = vadd.f32 0.0, %v1408
    %v1410 = vpop.f32.mrb[0].mxu0
    %1411 = vdwg.mxu0
    %v1412 = vmul.f32 %v1394, 0.17677669
    %v1413 = vmul.f32 %v1399, 0.17677669
    %v1414 = vmul.f32 %v1404, 0.17677669
    %v1415 = vmul.f32 %v1409, 0.17677669
    %v1416 = vadd.f32 %v1412, %v198
    %v1417 = vadd.f32 %v1413, %v199
    %v1418 = vadd.f32 %v1414, %v200
    %v1419 = vadd.f32 %v1415, %v201
    %v1420 = vsel %vm285, %v1416, -inf
    %1421 = vmax.xlane.f32.xlu0 %v1420
    %v1422 = vpop.xlane.xlu0 %1421
    %v1423 = vsel %vm285, %v1417, -inf
    %1424 = vmax.xlane.f32.xlu0 %v1423
    %v1425 = vpop.xlane.xlu0 %1424
    %v1426 = vsel %vm285, %v1418, -inf
    %1427 = vmax.xlane.f32.xlu0 %v1426
    %v1428 = vpop.xlane.xlu0 %1427
    %v1429 = vsel %vm285, %v1419, -inf
    %1430 = vmax.xlane.f32.xlu0 %v1429
    %v1431 = vpop.xlane.xlu0 %1430
    %v1432 = vsub.f32 %v1416, %v1422
    %v1433 = vsub.f32 %v1417, %v1425
    %v1434 = vsub.f32 %v1418, %v1428
    %v1435 = vsub.f32 %v1419, %v1431
    %v1436 = vmul.f32 %v1432, 1.442695
    %v1437 = vpow.pop %v1436
    %v1438 = vmul.f32 %v1433, 1.442695
    %v1439 = vpow.pop %v1438
    %v1440 = vmul.f32 %v1434, 1.442695
    %v1441 = vpow.pop %v1440
    %v1442 = vmul.f32 %v1435, 1.442695
    %v1443 = vpow.pop %v1442
    %v1444 = vsel %vm285, %v1437, 0.0
    %1445 = vadd.xlane.f32.xlu0 %v1444
    %v1446 = vpop.xlane.xlu0 %1445
    %v1447 = vsel %vm285, %v1439, 0.0
    %1448 = vadd.xlane.f32.xlu0 %v1447
    %v1449 = vpop.xlane.xlu0 %1448
    %v1450 = vsel %vm285, %v1441, 0.0
    %1451 = vadd.xlane.f32.xlu0 %v1450
    %v1452 = vpop.xlane.xlu0 %1451
    %v1453 = vsel %vm285, %v1443, 0.0
    %1454 = vadd.xlane.f32.xlu0 %v1453
    %v1455 = vpop.xlane.xlu0 %1454
    %v1456 = vrcp.pop %v1446
    %v1457 = vmul.f32 %v1437, %v1456
    %v1458 = vrcp.pop %v1449
    %v1459 = vmul.f32 %v1439, %v1458
    %v1460 = vrcp.pop %v1452
    %v1461 = vmul.f32 %v1441, %v1460
    %v1462 = vrcp.pop %v1455
    %v1463 = vmul.f32 %v1443, %v1462
    %v1465 = vsel %vm285, %v1457, 0
    %v1468 = vsel %vm285, %v1459, 0
    %v1471 = vsel %vm285, %v1461, 0
    %v1474 = vsel %vm285, %v1463, 0
    %1476 = vmatprep.subr.mxu0 0.0
    %1477 = vmatpush1.msra.mxu0 %v1212
    %1478 = vmatprep.subr.mxu0 0.0
    %1479 = vmatpush1.msra.mxu0 %v1213
    %1480 = vmatprep.subr.mxu0 0.0
    %1481 = vmatpush1.msra.mxu0 %v1210
    %1482 = vmatprep.subr.mxu0 0.0
    %1483 = vmatpush1.msra.mxu0 %v1211
    %1484 = vmatprep.subr.mxu0 0.0
    %1485 = vmatpush1.msra.mxu0 0.0
    %1486 = vmatprep.subr.mxu0 0.0
    %1487 = vmatpush1.msra.mxu0 0.0
    %1488 = vmatprep.subr.mxu0 0.0
    %1489 = vmatpush1.msra.mxu0 0.0
    %1490 = vmatprep.subr.mxu0 0.0
    %1491 = vmatpush1.msra.mxu0 0.0
    %1492 = vmatprep.subr.mxu0 0.0
    %1493 = vmatpush1.msra.mxu0 0.0
    %1494 = vmatprep.subr.mxu0 0.0
    %1495 = vmatpush1.msra.mxu0 0.0
    %1496 = vmatprep.subr.mxu0 0.0
    %1497 = vmatpush1.msra.mxu0 0.0
    %1498 = vmatprep.subr.mxu0 0.0
    %1499 = vmatpush1.msra.mxu0 0.0
    %1500 = vmatprep.subr.mxu0 0.0
    %1501 = vmatpush1.msra.mxu0 0.0
    %1502 = vmatprep.subr.mxu0 0.0
    %1503 = vmatpush1.msra.mxu0 0.0
    %1504 = vmatprep.subr.mxu0 0.0
    %1505 = vmatpush1.msra.mxu0 0.0
    %1506 = vmatprep.subr.mxu0 0.0
    %1507 = vmatpush1.msra.mxu0 0.0
    %1508 = vmatprep.subr.mxu0 0.0
    %1509 = vmatpush1.msra.mxu0 0.0
    %1510 = vmatprep.subr.mxu0 0.0
    %1511 = vmatpush1.msra.mxu0 0.0
    %1512 = vmatprep.subr.mxu0 0.0
    %1513 = vmatpush1.msra.mxu0 0.0
    %1514 = vmatprep.subr.mxu0 0.0
    %1515 = vmatpush1.msra.mxu0 0.0
    %1516 = vmatprep.subr.mxu0 0.0
    %1517 = vmatpush1.msra.mxu0 0.0
    %1518 = vmatprep.subr.mxu0 0.0
    %1519 = vmatpush1.msra.mxu0 0.0
    %1520 = vmatprep.subr.mxu0 0.0
    %1521 = vmatpush1.msra.mxu0 0.0
    %1522 = vmatprep.subr.mxu0 0.0
    %1523 = vmatpush1.msra.mxu0 0.0
    %1524 = vmatprep.subr.mxu0 0.0
    %1525 = vmatpush1.msra.mxu0 0.0
    %1526 = vmatprep.subr.mxu0 0.0
    %1527 = vmatpush1.msra.mxu0 0.0
    %1528 = vmatprep.subr.mxu0 0.0
    %1529 = vmatpush1.msra.mxu0 0.0
    %1530 = vmatprep.subr.mxu0 0.0
    %1531 = vmatpush1.msra.mxu0 0.0
    %1532 = vmatprep.subr.mxu0 0.0
    %1533 = vmatpush1.msra.mxu0 0.0
    %1534 = vmatprep.subr.mxu0 0.0
    %1535 = vmatpush1.msra.mxu0 0.0
    %1536 = vmatprep.subr.mxu0 0.0
    %1537 = vmatpush1.msra.mxu0 0.0
    %1538 = vmatprep.subr.mxu0 0.0
    %1539 = vmatpush1.msra.mxu0 0.0
    %1540 = vmatprep.mubr.f32.mxu0 0.0
    %1541 = vmatmul.mubr.f32.gmra.mrb[0].mxu0 %v1465
    %v1542 = vpop.f32.mrb[0].mxu0
    %v1543 = vadd.f32 0.0, %v1542
    %v1544 = vpop.f32.mrb[0].mxu0
    %1545 = vmatprep.mubr.f32.mxu0 0.0
    %1546 = vmatmul.mubr.f32.gmra.mrb[0].mxu0 %v1468
    %v1547 = vpop.f32.mrb[0].mxu0
    %v1548 = vadd.f32 0.0, %v1547
    %v1549 = vpop.f32.mrb[0].mxu0
    %1550 = vmatprep.mubr.f32.mxu0 0.0
    %1551 = vmatmul.mubr.f32.gmra.mrb[0].mxu0 %v1471
    %v1552 = vpop.f32.mrb[0].mxu0
    %v1553 = vadd.f32 0.0, %v1552
    %v1554 = vpop.f32.mrb[0].mxu0
    %1555 = vmatprep.mubr.f32.mxu0 0.0
    %1556 = vmatmul.mubr.f32.gmra.mrb[0].mxu0 %v1474
    %v1557 = vpop.f32.mrb[0].mxu0
    %v1558 = vadd.f32 0.0, %v1557
    %v1559 = vpop.f32.mrb[0].mxu0
    %1560 = vdwg.mxu0
    %v1561 = vsel %vm285, %v1543, -inf
    %v1562 = vrot.slane %v1561, 4
    %v1563 = vmax.f32 %v1561, %v1562
    %v1564 = vrot.slane %v1563, 2
    %v1565 = vmax.f32 %v1563, %v1564
    %v1566 = vrot.slane %v1565, 1
    %v1567 = vmax.f32 %v1565, %v1566
    %v1568 = vsel %vm285, %v1548, -inf
    %v1569 = vrot.slane %v1568, 4
    %v1570 = vmax.f32 %v1568, %v1569
    %v1571 = vrot.slane %v1570, 2
    %v1572 = vmax.f32 %v1570, %v1571
    %v1573 = vrot.slane %v1572, 1
    %v1574 = vmax.f32 %v1572, %v1573
    %v1575 = vsel %vm285, %v1553, -inf
    %v1576 = vrot.slane %v1575, 4
    %v1577 = vmax.f32 %v1575, %v1576
    %v1578 = vrot.slane %v1577, 2
    %v1579 = vmax.f32 %v1577, %v1578
    %v1580 = vrot.slane %v1579, 1
    %v1581 = vmax.f32 %v1579, %v1580
    %v1582 = vsel %vm285, %v1558, -inf
    %v1583 = vrot.slane %v1582, 4
    %v1584 = vmax.f32 %v1582, %v1583
    %v1585 = vrot.slane %v1584, 2
    %v1586 = vmax.f32 %v1584, %v1585
    %v1587 = vrot.slane %v1586, 1
    %v1588 = vmax.f32 %v1586, %v1587
    %vm1589 = vcmp.eq.f32.partialorder %v1543, %v1567
    %vm1590 = vcmp.eq.f32.partialorder %v1548, %v1574
    %vm1591 = vcmp.eq.f32.partialorder %v1553, %v1581
    %vm1592 = vcmp.eq.f32.partialorder %v1558, %v1588
    %v1593 = vsel %vm1589, %v46, 8
    %v1594 = vsel %vm1590, %v46, 8
    %v1595 = vsel %vm1591, %v46, 8
    %v1596 = vsel %vm1592, %v46, 8
    %v1597 = vsel %vm285, %v1593, 2147483647
    %v1598 = vrot.slane %v1597, 4
    %vm1599 = vcmp.lt.s32.totalorder %v1597, %v1598
    %v1600 = vsel %vm1599, %v1597, %v1598
    %v1601 = vrot.slane %v1600, 2
    %vm1602 = vcmp.lt.s32.totalorder %v1600, %v1601
    %v1603 = vsel %vm1602, %v1600, %v1601
    %v1604 = vrot.slane %v1603, 1
    %vm1605 = vcmp.lt.s32.totalorder %v1603, %v1604
    %v1606 = vsel %vm1605, %v1603, %v1604
    %v1607 = vsel %vm285, %v1594, 2147483647
    %v1608 = vrot.slane %v1607, 4
    %vm1609 = vcmp.lt.s32.totalorder %v1607, %v1608
    %v1610 = vsel %vm1609, %v1607, %v1608
    %v1611 = vrot.slane %v1610, 2
    %vm1612 = vcmp.lt.s32.totalorder %v1610, %v1611
    %v1613 = vsel %vm1612, %v1610, %v1611
    %v1614 = vrot.slane %v1613, 1
    %vm1615 = vcmp.lt.s32.totalorder %v1613, %v1614
    %v1616 = vsel %vm1615, %v1613, %v1614
    %v1617 = vsel %vm285, %v1595, 2147483647
    %v1618 = vrot.slane %v1617, 4
    %vm1619 = vcmp.lt.s32.totalorder %v1617, %v1618
    %v1620 = vsel %vm1619, %v1617, %v1618
    %v1621 = vrot.slane %v1620, 2
    %vm1622 = vcmp.lt.s32.totalorder %v1620, %v1621
    %v1623 = vsel %vm1622, %v1620, %v1621
    %v1624 = vrot.slane %v1623, 1
    %vm1625 = vcmp.lt.s32.totalorder %v1623, %v1624
    %v1626 = vsel %vm1625, %v1623, %v1624
    %v1627 = vsel %vm285, %v1596, 2147483647
    %v1628 = vrot.slane %v1627, 4
    %vm1629 = vcmp.lt.s32.totalorder %v1627, %v1628
    %v1630 = vsel %vm1629, %v1627, %v1628
    %v1631 = vrot.slane %v1630, 2
    %vm1632 = vcmp.lt.s32.totalorder %v1630, %v1631
    %v1633 = vsel %vm1632, %v1630, %v1631
    %v1634 = vrot.slane %v1633, 1
    %vm1635 = vcmp.lt.s32.totalorder %v1633, %v1634
    %v1636 = vsel %vm1635, %v1633, %v1634
    %vm1637 = vcmp.eq.s32.totalorder %v46, %v1606
    %vm1638 = vcmp.eq.s32.totalorder %v46, %v1616
    %vm1639 = vcmp.eq.s32.totalorder %v46, %v1626
    %vm1640 = vcmp.eq.s32.totalorder %v46, %v1636
    %v1641 = vsel %vm1637, -inf, %v1543
    %v1642 = vsel %vm1638, -inf, %v1548
    %v1643 = vsel %vm1639, -inf, %v1553
    %v1644 = vsel %vm1640, -inf, %v1558
    %v1645 = vsel %vm285, %v1641, -inf
    %v1646 = vrot.slane %v1645, 4
    %v1647 = vmax.f32 %v1645, %v1646
    %v1648 = vrot.slane %v1647, 2
    %v1649 = vmax.f32 %v1647, %v1648
    %v1650 = vrot.slane %v1649, 1
    %v1651 = vmax.f32 %v1649, %v1650
    %v1652 = vsel %vm285, %v1642, -inf
    %v1653 = vrot.slane %v1652, 4
    %v1654 = vmax.f32 %v1652, %v1653
    %v1655 = vrot.slane %v1654, 2
    %v1656 = vmax.f32 %v1654, %v1655
    %v1657 = vrot.slane %v1656, 1
    %v1658 = vmax.f32 %v1656, %v1657
    %v1659 = vsel %vm285, %v1643, -inf
    %v1660 = vrot.slane %v1659, 4
    %v1661 = vmax.f32 %v1659, %v1660
    %v1662 = vrot.slane %v1661, 2
    %v1663 = vmax.f32 %v1661, %v1662
    %v1664 = vrot.slane %v1663, 1
    %v1665 = vmax.f32 %v1663, %v1664
    %v1666 = vsel %vm285, %v1644, -inf
    %v1667 = vrot.slane %v1666, 4
    %v1668 = vmax.f32 %v1666, %v1667
    %v1669 = vrot.slane %v1668, 2
    %v1670 = vmax.f32 %v1668, %v1669
    %v1671 = vrot.slane %v1670, 1
    %v1672 = vmax.f32 %v1670, %v1671
    %v1677 = vsel %vm936, %v1574, %v1567
    %v1678 = vsel %vm938, %v1581, %v1677
    %v1679 = vsel %vm940, %v1588, %v1678
    %v1685 = vsel %vm936, %v1658, %v1651
    %v1686 = vsel %vm938, %v1665, %v1685
    %v1687 = vsel %vm940, %v1672, %v1686
    %1688 = vrot.lane.b32.xlu0 %v1687, 32
    %v1689 = vpop.permute.xlu0 %1688
    %v1691 = vsel %vm285, %v1679, %v1689
    %v1693 = vrot.slane %v1691, 6
    %1694 = vrot.lane.b32.xlu0 %v1693, 64
    %v1695 = vpop.permute.xlu0 %1694
    %v1697 = vsel %vm290, %v1691, %v1695
    %v1698 = vld [vmem:[%s9] sm:$0xff]
    %v1699 = vld [vmem:[%s9 + $0x8] sm:$0xff]
    %v1700 = vld [vmem:[%s9 + $0x10] sm:$0xff]
    %v1701 = vld [vmem:[%s9 + $0x18] sm:$0xff]
    %v1702 = vld [vmem:[%s9 + $0x20] sm:$0xff]
    %v1703 = vld [vmem:[%s9 + $0x28] sm:$0xff]
    %v1704 = vld [vmem:[%s9 + $0x30] sm:$0xff]
    %v1705 = vld [vmem:[%s9 + $0x38] sm:$0xff]
    %v1706 = vld [vmem:[%s9 + $0x40] sm:$0xff]
    %v1707 = vld [vmem:[%s9 + $0x48] sm:$0xff]
    %v1708 = vld [vmem:[%s9 + $0x50] sm:$0xff]
    %v1709 = vld [vmem:[%s9 + $0x58] sm:$0xff]
    %v1710 = vld [vmem:[%s9 + $0x60] sm:$0xff]
    %v1711 = vld [vmem:[%s9 + $0x68] sm:$0xff]
    %v1712 = vld [vmem:[%s9 + $0x70] sm:$0xff]
    %v1713 = vld [vmem:[%s9 + $0x78] sm:$0xff]
    %v1714 = vld [vmem:[%s9 + $0x80] sm:$0xff]
    %v1715 = vld [vmem:[%s9 + $0x88] sm:$0xff]
    %v1716 = vld [vmem:[%s9 + $0x90] sm:$0xff]
    %v1717 = vld [vmem:[%s9 + $0x98] sm:$0xff]
    %v1718 = vld [vmem:[%s9 + $0xa0] sm:$0xff]
    %v1719 = vld [vmem:[%s9 + $0xa8] sm:$0xff]
    %v1720 = vld [vmem:[%s9 + $0xb0] sm:$0xff]
    %v1721 = vld [vmem:[%s9 + $0xb8] sm:$0xff]
    %v1722 = vld [vmem:[%s9 + $0xc0] sm:$0xff]
    %v1723 = vld [vmem:[%s9 + $0xc8] sm:$0xff]
    %v1724 = vld [vmem:[%s9 + $0xd0] sm:$0xff]
    %v1725 = vld [vmem:[%s9 + $0xd8] sm:$0xff]
    %v1726 = vld [vmem:[%s9 + $0xe0] sm:$0xff]
    %v1727 = vld [vmem:[%s9 + $0xe8] sm:$0xff]
    %v1728 = vld [vmem:[%s9 + $0xf0] sm:$0xff]
    %v1729 = vld [vmem:[%s9 + $0xf8] sm:$0xff]
    %v1730 = vld [vmem:[%s10] sm:$0x1]
    %v1732 = vlaneseq
    %v1733 = vshrl.u32 %v1732, 7
    %v1734 = vsub.s32 0, %v1733
    %v1735 = vrot.slane %v1730, %v1734
    %v1739 = vrot.slane %v959, 2
    %v1740 = vrot.slane %v1697, 2
    %1743 = vmatprep.subr.mxu0 0.0
    %1744 = vmatpush1.msra.mxu0 %v1698
    %1745 = vmatprep.subr.mxu0 0.0
    %1746 = vmatpush1.msra.mxu0 %v1699
    %1747 = vmatprep.subr.mxu0 0.0
    %1748 = vmatpush1.msra.mxu0 %v1700
    %1749 = vmatprep.subr.mxu0 0.0
    %1750 = vmatpush1.msra.mxu0 %v1701
    %1751 = vmatprep.subr.mxu0 0.0
    %1752 = vmatpush1.msra.mxu0 %v1702
    %1753 = vmatprep.subr.mxu0 0.0
    %1754 = vmatpush1.msra.mxu0 %v1703
    %1755 = vmatprep.subr.mxu0 0.0
    %1756 = vmatpush1.msra.mxu0 %v1704
    %1757 = vmatprep.subr.mxu0 0.0
    %1758 = vmatpush1.msra.mxu0 %v1705
    %1759 = vmatprep.subr.mxu0 0.0
    %1760 = vmatpush1.msra.mxu0 %v1706
    %1761 = vmatprep.subr.mxu0 0.0
    %1762 = vmatpush1.msra.mxu0 %v1707
    %1763 = vmatprep.subr.mxu0 0.0
    %1764 = vmatpush1.msra.mxu0 %v1708
    %1765 = vmatprep.subr.mxu0 0.0
    %1766 = vmatpush1.msra.mxu0 %v1709
    %1767 = vmatprep.subr.mxu0 0.0
    %1768 = vmatpush1.msra.mxu0 %v1710
    %1769 = vmatprep.subr.mxu0 0.0
    %1770 = vmatpush1.msra.mxu0 %v1711
    %1771 = vmatprep.subr.mxu0 0.0
    %1772 = vmatpush1.msra.mxu0 %v1712
    %1773 = vmatprep.subr.mxu0 0.0
    %1774 = vmatpush1.msra.mxu0 %v1713
    %1775 = vmatprep.subr.mxu0 0.0
    %1776 = vmatpush1.msra.mxu0 %v1714
    %1777 = vmatprep.subr.mxu0 0.0
    %1778 = vmatpush1.msra.mxu0 %v1715
    %1779 = vmatprep.subr.mxu0 0.0
    %1780 = vmatpush1.msra.mxu0 %v1716
    %1781 = vmatprep.subr.mxu0 0.0
    %1782 = vmatpush1.msra.mxu0 %v1717
    %1783 = vmatprep.subr.mxu0 0.0
    %1784 = vmatpush1.msra.mxu0 %v1718
    %1785 = vmatprep.subr.mxu0 0.0
    %1786 = vmatpush1.msra.mxu0 %v1719
    %1787 = vmatprep.subr.mxu0 0.0
    %1788 = vmatpush1.msra.mxu0 %v1720
    %1789 = vmatprep.subr.mxu0 0.0
    %1790 = vmatpush1.msra.mxu0 %v1721
    %1791 = vmatprep.subr.mxu0 0.0
    %1792 = vmatpush1.msra.mxu0 %v1722
    %1793 = vmatprep.subr.mxu0 0.0
    %1794 = vmatpush1.msra.mxu0 %v1723
    %1795 = vmatprep.subr.mxu0 0.0
    %1796 = vmatpush1.msra.mxu0 %v1724
    %1797 = vmatprep.subr.mxu0 0.0
    %1798 = vmatpush1.msra.mxu0 %v1725
    %1799 = vmatprep.subr.mxu0 0.0
    %1800 = vmatpush1.msra.mxu0 %v1726
    %1801 = vmatprep.subr.mxu0 0.0
    %1802 = vmatpush1.msra.mxu0 %v1727
    %1803 = vmatprep.subr.mxu0 0.0
    %1804 = vmatpush1.msra.mxu0 %v1728
    %1805 = vmatprep.subr.mxu0 0.0
    %1806 = vmatpush1.msra.mxu0 %v1729
    %1807 = vmatprep.mubr.f32.mxu0 %v1740
    %1808 = vmatmul.mubr.f32.gmra.mrb[0].mxu0 %v1739
    %v1809 = vpop.f32.mrb[0].mxu0
    %v1810 = vadd.f32 %v1735, %v1809
    %v1811 = vpop.f32.mrb[0].mxu0
    %1812 = vdwg.mxu0
    %v1813 = vtanh.pop %v1810
    %v1814 = vld [vmem:[%s11] sm:$0xff]
    %v1815 = vld [vmem:[%s11 + $0x8] sm:$0xff]
    %v1816 = vld [vmem:[%s11 + $0x10] sm:$0xff]
    %v1817 = vld [vmem:[%s11 + $0x18] sm:$0xff]
    %v1818 = vld [vmem:[%s12] sm:$0x1]
    %v1820 = vlaneseq
    %v1821 = vshrl.u32 %v1820, 7
    %v1822 = vsub.s32 0, %v1821
    %v1823 = vrot.slane %v1818, %v1822
    %v1826 = vsel %vm285, %v1813, 0
    %1828 = vmatprep.subr.mxu0 0.0
    %1829 = vmatpush1.msra.mxu0 %v1814
    %1830 = vmatprep.subr.mxu0 0.0
    %1831 = vmatpush1.msra.mxu0 %v1815
    %1832 = vmatprep.subr.mxu0 0.0
    %1833 = vmatpush1.msra.mxu0 %v1816
    %1834 = vmatprep.subr.mxu0 0.0
    %1835 = vmatpush1.msra.mxu0 %v1817
    %1836 = vmatprep.subr.mxu0 0.0
    %1837 = vmatpush1.msra.mxu0 0.0
    %1838 = vmatprep.subr.mxu0 0.0
    %1839 = vmatpush1.msra.mxu0 0.0
    %1840 = vmatprep.subr.mxu0 0.0
    %1841 = vmatpush1.msra.mxu0 0.0
    %1842 = vmatprep.subr.mxu0 0.0
    %1843 = vmatpush1.msra.mxu0 0.0
    %1844 = vmatprep.subr.mxu0 0.0
    %1845 = vmatpush1.msra.mxu0 0.0
    %1846 = vmatprep.subr.mxu0 0.0
    %1847 = vmatpush1.msra.mxu0 0.0
    %1848 = vmatprep.subr.mxu0 0.0
    %1849 = vmatpush1.msra.mxu0 0.0
    %1850 = vmatprep.subr.mxu0 0.0
    %1851 = vmatpush1.msra.mxu0 0.0
    %1852 = vmatprep.subr.mxu0 0.0
    %1853 = vmatpush1.msra.mxu0 0.0
    %1854 = vmatprep.subr.mxu0 0.0
    %1855 = vmatpush1.msra.mxu0 0.0
    %1856 = vmatprep.subr.mxu0 0.0
    %1857 = vmatpush1.msra.mxu0 0.0
    %1858 = vmatprep.subr.mxu0 0.0
    %1859 = vmatpush1.msra.mxu0 0.0
    %1860 = vmatprep.subr.mxu0 0.0
    %1861 = vmatpush1.msra.mxu0 0.0
    %1862 = vmatprep.subr.mxu0 0.0
    %1863 = vmatpush1.msra.mxu0 0.0
    %1864 = vmatprep.subr.mxu0 0.0
    %1865 = vmatpush1.msra.mxu0 0.0
    %1866 = vmatprep.subr.mxu0 0.0
    %1867 = vmatpush1.msra.mxu0 0.0
    %1868 = vmatprep.subr.mxu0 0.0
    %1869 = vmatpush1.msra.mxu0 0.0
    %1870 = vmatprep.subr.mxu0 0.0
    %1871 = vmatpush1.msra.mxu0 0.0
    %1872 = vmatprep.subr.mxu0 0.0
    %1873 = vmatpush1.msra.mxu0 0.0
    %1874 = vmatprep.subr.mxu0 0.0
    %1875 = vmatpush1.msra.mxu0 0.0
    %1876 = vmatprep.subr.mxu0 0.0
    %1877 = vmatpush1.msra.mxu0 0.0
    %1878 = vmatprep.subr.mxu0 0.0
    %1879 = vmatpush1.msra.mxu0 0.0
    %1880 = vmatprep.subr.mxu0 0.0
    %1881 = vmatpush1.msra.mxu0 0.0
    %1882 = vmatprep.subr.mxu0 0.0
    %1883 = vmatpush1.msra.mxu0 0.0
    %1884 = vmatprep.subr.mxu0 0.0
    %1885 = vmatpush1.msra.mxu0 0.0
    %1886 = vmatprep.subr.mxu0 0.0
    %1887 = vmatpush1.msra.mxu0 0.0
    %1888 = vmatprep.subr.mxu0 0.0
    %1889 = vmatpush1.msra.mxu0 0.0
    %1890 = vmatprep.subr.mxu0 0.0
    %1891 = vmatpush1.msra.mxu0 0.0
    %1892 = vmatprep.mubr.f32.mxu0 0.0
    %1893 = vmatmul.mubr.f32.gmra.mrb[0].mxu0 %v1826
    %v1894 = vpop.f32.mrb[0].mxu0
    %v1895 = vadd.f32 %v1823, %v1894
    %v1896 = vpop.f32.mrb[0].mxu0
    %1897 = vdwg.mxu0
    %vm1898 = vcmask 25600
    %1899 = vst.msk [vmem:[#allocation2] sm:$0x3] %vm1898, %v1895
    // Predicated region
    $region54: #{tpu_custom_call.1} parent=1 // pred_check
      _
    $region55: #{tpu_custom_call.1} parent=1 // pred_check_branch
      %1901 = sbr.rel (0) target = $region57
    $region56: #{tpu_custom_call.1} parent=1 // pred_region
      %s1903 = ssub.s32 32, 32
      %1904 = vsyncadd [#allocation3], %s1903
      %s1906 = sshll.u32 [#allocation2], 4
      %s1907 = int_to_ptr.vmem [resolvable:$true] %s1906
      %1909 = dma.vmem_to_hbm [thread:$0]  %s1907, 32, %s13, [#allocation3]
    $region57: #{tpu_custom_call.1} parent=1 // pred_fallthru
      _
    // Predicated region
    $region58: #{tpu_custom_call.1} parent=1 // pred_check
      _
    $region59: #{tpu_custom_call.1} parent=1 // pred_check_branch
      %1911 = sbr.rel (0) target = $region61
    $region60: #{tpu_custom_call.1} parent=1 // pred_region
      %1912 = dma.done [#allocation3], 32
    $region61: #{tpu_custom_call.1} parent=1 // pred_fallthru
      _
    %1913 = vsyncpa [#allocation3], 1

</llo_original>
